<compile_context>
chip_gen: v7x
topology: tpu7x:2x2x1
jax: 0.10.0
libtpu: 0.0.40
codegen_flags: <defaults>
</compile_context>

<pallas_src>
import jax
import jax.numpy as jnp
from jax.experimental import pallas as pl
from jax.experimental.pallas import tpu as pltpu

K = 7            # conv2 kernel size
PAD = K // 2     # "same" padding
C = 256          # conv channel width (fixed by the module)
H = 32           # hidden width of the MLP head (fixed by the module)
OUT_LANES = 128  # lane-padded output width (out_dim zero-padded to 128)


def _kernel(x_ref, mask_ref,
            w1_ref, b1_ref, w2_ref, b2_ref,
            w3_ref, b3_ref, w4_ref, b4_ref,
            out_ref, pad_ref):
    Tb, L, E = x_ref.shape
    M = Tb * L

    # ---- conv1 (kernel_size=1) == matmul; bf16 operands, f32 accumulate, ReLU ----
    x = x_ref[...].reshape(M, E)                                        # bf16 [M, E]
    h1 = jnp.dot(x, w1_ref[...], preferred_element_type=jnp.float32) + b1_ref[...]
    h1 = jnp.maximum(h1, 0.0).astype(jnp.bfloat16)                      # bf16 [M, C]

    # ---- conv2 (kernel_size=7, padding=3): zero-haloed scratch + ONE fused matmul ----
    # pad_ref[b, PAD + l, :] = h1[b, l, :]; halo rows are zero, so tap k for output
    # position l is simply pad_ref[:, l + k, :] -- no rolls, no position masks, and
    # no cross-sequence leakage (each sequence owns its own slab of the scratch).
    zero_halo = jnp.zeros((Tb, PAD, C), jnp.bfloat16)
    pad_ref[:, 0:PAD, :] = zero_halo
    pad_ref[:, PAD + L:PAD + L + PAD, :] = zero_halo
    pad_ref[:, PAD:PAD + L, :] = h1.reshape(Tb, L, C)

    h1cat = jnp.concatenate(
        [pad_ref[:, k:k + L, :] for k in range(K)], axis=-1
    ).reshape(M, K * C)                                                 # bf16 [M, K*C]
    h2 = jnp.dot(h1cat, w2_ref[...], preferred_element_type=jnp.float32) + b2_ref[...]
    h2 = jnp.maximum(h2, 0.0)                                           # f32 [M, C]
    # conv dropout: identity in eval mode.

    # ---- masked mean + max pooling per sequence (VPU/XLU, no MXU) ----
    h2s = h2.reshape(Tb, L, C)
    m = mask_ref[0]                                                     # f32 [Tb, L]
    msum = jnp.maximum(jnp.sum(m, axis=1, keepdims=True), 1.0)          # [Tb, 1] (guard /0)
    o1 = jnp.sum(h2s * m[:, :, None], axis=1) / msum                    # [Tb, C]
    o2 = jnp.max(h2s, axis=1)                                           # [Tb, C] (unmasked, as in reference)

    # ---- Linear(512, 32) on concat([o1, o2]) without materializing the concat ----
    z = (jnp.dot(o1, w3_ref[0:C, :], preferred_element_type=jnp.float32)
         + jnp.dot(o2, w3_ref[C:2 * C, :], preferred_element_type=jnp.float32)
         + b3_ref[...])                                                 # [Tb, 32]
    # Dropout (identity, eval) -> ReLU; BatchNorm is folded into w4/b4 in the wrapper.
    z = jnp.maximum(z, 0.0)

    # ---- output Linear(32, out_dim), zero-padded to 128 lanes (dense, unmasked store) ----
    out_ref[0] = jnp.dot(z, w4_ref[...], preferred_element_type=jnp.float32) + b4_ref[...]


def conv_max_avg_pool_small(x_bel, mask, params, *, rows_target=512):
    """x_bel: [B, E, L] (PyTorch NCL layout), mask: [B, L] (1.0 = valid).

    rows_target: desired Tb*L rows per grid step (~512 on v6e/v7x; 256-512 on v5e).
    """
    (w1, b1, w2, b2, w3, b3, bn_scale, bn_bias, w4, b4) = params
    B, E, L = x_bel.shape
    out_dim = w4.shape[-1]

    # Batch tile: enough sequences per grid step to fill the MXU rows, but keep the
    # grid at >= 2 steps when B >= 2 so v7x's second TensorCore gets work.
    Tb = max(1, min(B, rows_target // L)) if L < rows_target else 1
    if B >= 2:
        Tb = min(Tb, pl.cdiv(B, 2))
    G = pl.cdiv(B, Tb)
    B_pad = G * Tb

    x = jnp.transpose(x_bel, (0, 2, 1)).astype(jnp.bfloat16)            # [B, L, E]
    m = mask.astype(jnp.float32)                                        # [B, L]
    if B_pad != B:
        x = jnp.pad(x, ((0, B_pad - B), (0, 0), (0, 0)))
        m = jnp.pad(m, ((0, B_pad - B), (0, 0)))
    m = m.reshape(G, Tb, L)                                             # sublane/lane-dense mask blocks

    # Conv matmul operands in bf16; conv2 taps fused along the contraction axis.
    w1b = w1.astype(jnp.bfloat16)                                       # [E, C]
    w2b = w2.reshape(K * C, C).astype(jnp.bfloat16)                     # [K*C, C]
    # Fold eval-mode BatchNorm affine into the output linear, then pad to 128 lanes
    # -> lane-dense, unmasked writeback.
    w4f = w4 * bn_scale.reshape(H, 1)                                   # [H, out_dim]
    b4f = b4 + bn_bias @ w4                                             # [1, out_dim]
    w4p = jnp.zeros((H, OUT_LANES), jnp.float32).at[:, :out_dim].set(w4f)
    b4p = jnp.zeros((1, OUT_LANES), jnp.float32).at[:, :out_dim].set(b4f)

    def const(shape):
        # Constant-index weight block: fetched once; single-buffered to save VMEM.
        n = len(shape)
        return pl.BlockSpec(shape, lambda b: (0,) * n, pipeline_mode=pl.Buffered(1))

    out = pl.pallas_call(
        _kernel,
        out_shape=jax.ShapeDtypeStruct((G, Tb, OUT_LANES), jnp.float32),
        grid_spec=pltpu.PrefetchScalarGridSpec(
            num_scalar_prefetch=0,
            grid=(G,),
            in_specs=[
                pl.BlockSpec((Tb, L, E), lambda b: (b, 0, 0)),   # x
                pl.BlockSpec((1, Tb, L), lambda b: (b, 0, 0)),   # mask (dense block)
                const((E, C)), const((1, C)),                    # conv1
                const((K * C, C)), const((1, C)),                # conv2 (taps fused)
                const((2 * C, H)), const((1, H)),                # linear 512->32
                const((H, OUT_LANES)), const((1, OUT_LANES)),    # output linear (BN folded, lane-padded)
            ],
            out_specs=pl.BlockSpec((1, Tb, OUT_LANES), lambda b: (b, 0, 0)),
            scratch_shapes=[pltpu.VMEM((Tb, L + 2 * PAD, C), jnp.bfloat16)],
        ),
        compiler_params=pltpu.CompilerParams(
            dimension_semantics=("parallel",),       # batch tiles are independent
            vmem_limit_bytes=48 * 1024 * 1024),
    )(x, m, w1b, b1, w2b, b2, w3, b3, w4p, b4p)
    return out.reshape(B_pad, OUT_LANES)[:B, :out_dim]


def init_params(key, embeddings_dim, output_dim=10):
    """Deterministic synthetic parameters (same shapes as the PyTorch module,
    stored pre-transposed for right-multiplication)."""
    ks = jax.random.split(key, 8)
    s = 0.05
    w1 = jax.random.normal(ks[0], (embeddings_dim, C), jnp.float32) * s  # conv1.weight[C,E,1] -> [E,C]
    b1 = jax.random.normal(ks[1], (1, C), jnp.float32) * s
    w2 = jax.random.normal(ks[2], (K, C, C), jnp.float32) * s            # conv2.weight[C,C,K] -> [K,C_in,C_out]
    b2 = jax.random.normal(ks[3], (1, C), jnp.float32) * s
    w3 = jax.random.normal(ks[4], (2 * C, H), jnp.float32) * s           # linear.weight[32,512].T
    b3 = jax.random.normal(ks[5], (1, H), jnp.float32) * s
    w4 = jax.random.normal(ks[6], (H, output_dim), jnp.float32) * s      # output.weight[10,32].T
    b4 = jax.random.normal(ks[7], (1, output_dim), jnp.float32) * s
    # BatchNorm1d(32) eval mode, PyTorch defaults: gamma=1, beta=0, mean=0, var=1.
    eps = 1e-5
    gamma = jnp.ones((1, H), jnp.float32)
    beta = jnp.zeros((1, H), jnp.float32)
    rmean = jnp.zeros((1, H), jnp.float32)
    rvar = jnp.ones((1, H), jnp.float32)
    bn_scale = gamma / jnp.sqrt(rvar + eps)
    bn_bias = beta - rmean * bn_scale
    return (w1, b1, w2, b2, w3, b3, bn_scale, bn_bias, w4, b4)


def reference(x_bel, mask, params):
    """Pure-JAX f32 reference mirroring the PyTorch forward (eval mode)."""
    (w1, b1, w2, b2, w3, b3, bn_scale, bn_bias, w4, b4) = params
    x = jnp.transpose(x_bel, (0, 2, 1)).astype(jnp.float32)  # [B, L, E]
    L = x.shape[1]
    h1 = jax.nn.relu(jnp.einsum('ble,ec->blc', x, w1) + b1[None])
    h1p = jnp.pad(h1, ((0, 0), (PAD, PAD), (0, 0)))
    acc = 0.0
    for k in range(K):
        acc = acc + jnp.einsum('blc,cd->bld', h1p[:, k:k + L, :], w2[k])
    h2 = jax.nn.relu(acc + b2[None])
    m = mask.astype(jnp.float32)
    o1 = jnp.einsum('blc,bl->bc', h2, m) / jnp.sum(m, axis=1, keepdims=True)
    o2 = jnp.max(h2, axis=1)
    feat = jnp.concatenate([o1, o2], axis=-1)
    z = jax.nn.relu(feat @ w3 + b3)
    z = z * bn_scale + bn_bias
    return z @ w4 + b4


if __name__ == "__main__":
    B, E, L, OUT = 2, 64, 16, 10   # small shapes: batch=2, embeddings_dim=64, seq=16
    key = jax.random.PRNGKey(0)
    kx, kp = jax.random.split(key)

    x = jax.random.normal(kx, (B, E, L), jnp.float32)        # PyTorch [B, embeddings_dim, L]
    lengths = jnp.array([L, 11], dtype=jnp.int32)
    mask = (jnp.arange(L)[None, :] < lengths[:, None]).astype(jnp.float32)  # [B, L]
    # sequence_lengths / frequencies args of the PyTorch forward are unused.

    params = init_params(kp, E, OUT)

    out = conv_max_avg_pool_small(x, mask, params)
    out = jax.block_until_ready(out)

    ref = reference(x, mask, params)
    assert out.shape == (B, OUT), out.shape
    # bf16 MXU operands in the conv matmuls (f32 accumulation) -> slightly looser tolerance.
    assert bool(jnp.allclose(out, ref, atol=2e-2, rtol=2e-2)), (out, ref)
    print("KERNEL_OK")
</pallas_src>

<mosaic_0001>
module attributes {stable_mosaic.version = 11 : i64} {
  func.func @_kernel(%arg0: i32, %arg1: memref<1x16x64xbf16, #tpu.memory_space<vmem>>, %arg2: memref<1x1x16xf32, #tpu.memory_space<vmem>>, %arg3: memref<64x256xbf16, #tpu.memory_space<vmem>>, %arg4: memref<1x256xf32, #tpu.memory_space<vmem>>, %arg5: memref<1792x256xbf16, #tpu.memory_space<vmem>>, %arg6: memref<1x256xf32, #tpu.memory_space<vmem>>, %arg7: memref<512x32xf32, #tpu.memory_space<vmem>>, %arg8: memref<1x32xf32, #tpu.memory_space<vmem>>, %arg9: memref<32x128xf32, #tpu.memory_space<vmem>>, %arg10: memref<1x128xf32, #tpu.memory_space<vmem>>, %arg11: memref<1x1x128xf32, #tpu.memory_space<vmem>>, %arg12: memref<1x22x256xbf16, #tpu.memory_space<vmem>>) attributes {dimension_semantics = [#tpu.dimension_semantics<parallel>], iteration_bounds = array<i64: 2>, scalar_prefetch = 0 : i64, scratch_operands = 1 : i64, tpu.core_type = #tpu.core_type<tc>, window_params = [{transform_indices = @transform_0, window_bounds = array<i64: 1, 16, 64>}, {transform_indices = @transform_1, window_bounds = array<i64: 1, 1, 16>}, {pipeline_mode = #tpu.pipeline_mode<synchronous>, transform_indices = @transform_2, window_bounds = array<i64: 64, 256>}, {pipeline_mode = #tpu.pipeline_mode<synchronous>, transform_indices = @transform_3, window_bounds = array<i64: 1, 256>}, {pipeline_mode = #tpu.pipeline_mode<synchronous>, transform_indices = @transform_4, window_bounds = array<i64: 1792, 256>}, {pipeline_mode = #tpu.pipeline_mode<synchronous>, transform_indices = @transform_5, window_bounds = array<i64: 1, 256>}, {pipeline_mode = #tpu.pipeline_mode<synchronous>, transform_indices = @transform_6, window_bounds = array<i64: 512, 32>}, {pipeline_mode = #tpu.pipeline_mode<synchronous>, transform_indices = @transform_7, window_bounds = array<i64: 1, 32>}, {pipeline_mode = #tpu.pipeline_mode<synchronous>, transform_indices = @transform_8, window_bounds = array<i64: 32, 128>}, {pipeline_mode = #tpu.pipeline_mode<synchronous>, transform_indices = @transform_9, window_bounds = array<i64: 1, 128>}, {transform_indices = @transform_10, window_bounds = array<i64: 1, 1, 128>}]} {
    %c0 = arith.constant 0 : index
    %c0_0 = arith.constant 0 : index
    %c0_1 = arith.constant 0 : index
    %0 = vector.load %arg1[%c0, %c0_0, %c0_1] : memref<1x16x64xbf16, #tpu.memory_space<vmem>>, vector<1x16x64xbf16>
    %1 = vector.shape_cast %0 : vector<1x16x64xbf16> to vector<16x64xbf16>
    %c0_2 = arith.constant 0 : index
    %c0_3 = arith.constant 0 : index
    %2 = vector.load %arg3[%c0_2, %c0_3] : memref<64x256xbf16, #tpu.memory_space<vmem>>, vector<64x256xbf16>
    %cst = arith.constant dense<0.000000e+00> : vector<16x256xf32>
    %3 = tpu.matmul %1, %2, %cst {dimension_numbers = #tpu.dot_dimension_numbers<[1], [0], [0], [1], [0, 0, 1, 1], [], []>} : vector<16x64xbf16>, vector<64x256xbf16>, vector<16x256xf32> -> vector<16x256xf32>
    %c0_4 = arith.constant 0 : index
    %c0_5 = arith.constant 0 : index
    %4 = vector.load %arg4[%c0_4, %c0_5] : memref<1x256xf32, #tpu.memory_space<vmem>>, vector<1x256xf32>
    %5 = vector.broadcast %4 : vector<1x256xf32> to vector<16x256xf32>
    %6 = arith.addf %3, %5 : vector<16x256xf32>
    %cst_6 = arith.constant 0.000000e+00 : f32
    %7 = vector.broadcast %cst_6 : f32 to vector<16x256xf32>
    %8 = arith.maximumf %6, %7 : vector<16x256xf32>
    %9 = arith.truncf %8 : vector<16x256xf32> to vector<16x256xbf16>
    %cst_7 = arith.constant 0.000000e+00 : bf16
    %10 = vector.broadcast %cst_7 : bf16 to vector<1x3x256xbf16>
    %c0_8 = arith.constant 0 : index
    %c0_9 = arith.constant 0 : index
    %c0_10 = arith.constant 0 : index
    %11 = vector.load %arg12[%c0_8, %c0_9, %c0_10] : memref<1x22x256xbf16, #tpu.memory_space<vmem>>, vector<1x3x256xbf16>
    tpu.vector_store %arg12[%c0_8, %c0_9, %c0_10], %10 {strides = array<i32>} : memref<1x22x256xbf16, #tpu.memory_space<vmem>>, vector<1x3x256xbf16>,
    %c0_11 = arith.constant 0 : index
    %c19 = arith.constant 19 : index
    %c0_12 = arith.constant 0 : index
    %12 = vector.load %arg12[%c0_11, %c19, %c0_12] : memref<1x22x256xbf16, #tpu.memory_space<vmem>>, vector<1x3x256xbf16>
    tpu.vector_store %arg12[%c0_11, %c19, %c0_12], %10 {strides = array<i32>} : memref<1x22x256xbf16, #tpu.memory_space<vmem>>, vector<1x3x256xbf16>,
    %13 = vector.shape_cast %9 : vector<16x256xbf16> to vector<1x16x256xbf16>
    %c0_13 = arith.constant 0 : index
    %c3 = arith.constant 3 : index
    %c0_14 = arith.constant 0 : index
    %14 = vector.load %arg12[%c0_13, %c3, %c0_14] : memref<1x22x256xbf16, #tpu.memory_space<vmem>>, vector<1x16x256xbf16>
    tpu.vector_store %arg12[%c0_13, %c3, %c0_14], %13 {strides = array<i32>} : memref<1x22x256xbf16, #tpu.memory_space<vmem>>, vector<1x16x256xbf16>,
    %c0_15 = arith.constant 0 : index
    %c0_16 = arith.constant 0 : index
    %c0_17 = arith.constant 0 : index
    %15 = vector.load %arg12[%c0_15, %c0_16, %c0_17] : memref<1x22x256xbf16, #tpu.memory_space<vmem>>, vector<1x16x256xbf16>
    %c0_18 = arith.constant 0 : index
    %c1 = arith.constant 1 : index
    %c0_19 = arith.constant 0 : index
    %16 = vector.load %arg12[%c0_18, %c1, %c0_19] : memref<1x22x256xbf16, #tpu.memory_space<vmem>>, vector<1x16x256xbf16>
    %c0_20 = arith.constant 0 : index
    %c2 = arith.constant 2 : index
    %c0_21 = arith.constant 0 : index
    %17 = vector.load %arg12[%c0_20, %c2, %c0_21] : memref<1x22x256xbf16, #tpu.memory_space<vmem>>, vector<1x16x256xbf16>
    %c0_22 = arith.constant 0 : index
    %c3_23 = arith.constant 3 : index
    %c0_24 = arith.constant 0 : index
    %18 = vector.load %arg12[%c0_22, %c3_23, %c0_24] : memref<1x22x256xbf16, #tpu.memory_space<vmem>>, vector<1x16x256xbf16>
    %c0_25 = arith.constant 0 : index
    %c4 = arith.constant 4 : index
    %c0_26 = arith.constant 0 : index
    %19 = vector.load %arg12[%c0_25, %c4, %c0_26] : memref<1x22x256xbf16, #tpu.memory_space<vmem>>, vector<1x16x256xbf16>
    %c0_27 = arith.constant 0 : index
    %c5 = arith.constant 5 : index
    %c0_28 = arith.constant 0 : index
    %20 = vector.load %arg12[%c0_27, %c5, %c0_28] : memref<1x22x256xbf16, #tpu.memory_space<vmem>>, vector<1x16x256xbf16>
    %c0_29 = arith.constant 0 : index
    %c6 = arith.constant 6 : index
    %c0_30 = arith.constant 0 : index
    %21 = vector.load %arg12[%c0_29, %c6, %c0_30] : memref<1x22x256xbf16, #tpu.memory_space<vmem>>, vector<1x16x256xbf16>
    %22 = tpu.concatenate %15, %16, %17, %18, %19, %20, %21 in 2 : vector<1x16x256xbf16>, vector<1x16x256xbf16>, vector<1x16x256xbf16>, vector<1x16x256xbf16>, vector<1x16x256xbf16>, vector<1x16x256xbf16>, vector<1x16x256xbf16> -> vector<1x16x1792xbf16>
    %23 = vector.shape_cast %22 : vector<1x16x1792xbf16> to vector<16x1792xbf16>
    %c0_31 = arith.constant 0 : index
    %c0_32 = arith.constant 0 : index
    %24 = vector.load %arg5[%c0_31, %c0_32] : memref<1792x256xbf16, #tpu.memory_space<vmem>>, vector<1792x256xbf16>
    %cst_33 = arith.constant dense<0.000000e+00> : vector<16x256xf32>
    %25 = tpu.matmul %23, %24, %cst_33 {dimension_numbers = #tpu.dot_dimension_numbers<[1], [0], [0], [1], [0, 0, 1, 1], [], []>} : vector<16x1792xbf16>, vector<1792x256xbf16>, vector<16x256xf32> -> vector<16x256xf32>
    %c0_34 = arith.constant 0 : index
    %c0_35 = arith.constant 0 : index
    %26 = vector.load %arg6[%c0_34, %c0_35] : memref<1x256xf32, #tpu.memory_space<vmem>>, vector<1x256xf32>
    %27 = vector.broadcast %26 : vector<1x256xf32> to vector<16x256xf32>
    %28 = arith.addf %25, %27 : vector<16x256xf32>
    %cst_36 = arith.constant 0.000000e+00 : f32
    %29 = vector.broadcast %cst_36 : f32 to vector<16x256xf32>
    %30 = arith.maximumf %28, %29 : vector<16x256xf32>
    %31 = vector.shape_cast %30 : vector<16x256xf32> to vector<1x16x256xf32>
    %c0_37 = arith.constant 0 : index
    %c0_38 = arith.constant 0 : index
    %c0_39 = arith.constant 0 : index
    %32 = vector.load %arg2[%c0_37, %c0_38, %c0_39] : memref<1x1x16xf32, #tpu.memory_space<vmem>>, vector<1x1x16xf32>
    %33 = vector.shape_cast %32 : vector<1x1x16xf32> to vector<1x16xf32>
    %cst_40 = arith.constant dense<0.000000e+00> : vector<1xf32>
    %34 = vector.multi_reduction <add>, %33, %cst_40 [1] : vector<1x16xf32> to vector<1xf32>
    %35 = vector.shape_cast %34 : vector<1xf32> to vector<1x1xf32>
    %cst_41 = arith.constant 1.000000e+00 : f32
    %36 = vector.broadcast %cst_41 : f32 to vector<1x1xf32>
    %37 = arith.maximumf %35, %36 : vector<1x1xf32>
    %38 = vector.shape_cast %33 : vector<1x16xf32> to vector<1x16x1xf32>
    %39 = vector.broadcast %38 : vector<1x16x1xf32> to vector<1x16x256xf32>
    %40 = arith.mulf %31, %39 : vector<1x16x256xf32>
    %cst_42 = arith.constant dense<0.000000e+00> : vector<1x256xf32>
    %41 = vector.multi_reduction <add>, %40, %cst_42 [1] : vector<1x16x256xf32> to vector<1x256xf32>
    %42 = vector.broadcast %37 : vector<1x1xf32> to vector<1x256xf32>
    %43 = arith.divf %41, %42 : vector<1x256xf32>
    %cst_43 = arith.constant dense<0xFF800000> : vector<1x256xf32>
    %44 = vector.multi_reduction <maximumf>, %31, %cst_43 [1] : vector<1x16x256xf32> to vector<1x256xf32>
    %c0_44 = arith.constant 0 : index
    %c0_45 = arith.constant 0 : index
    %45 = vector.load %arg7[%c0_44, %c0_45] : memref<512x32xf32, #tpu.memory_space<vmem>>, vector<256x32xf32>
    %cst_46 = arith.constant dense<0.000000e+00> : vector<1x32xf32>
    %46 = tpu.matmul %43, %45, %cst_46 {dimension_numbers = #tpu.dot_dimension_numbers<[1], [0], [0], [1], [0, 0, 1, 1], [], []>} : vector<1x256xf32>, vector<256x32xf32>, vector<1x32xf32> -> vector<1x32xf32>
    %c256 = arith.constant 256 : index
    %c0_47 = arith.constant 0 : index
    %47 = vector.load %arg7[%c256, %c0_47] : memref<512x32xf32, #tpu.memory_space<vmem>>, vector<256x32xf32>
    %cst_48 = arith.constant dense<0.000000e+00> : vector<1x32xf32>
    %48 = tpu.matmul %44, %47, %cst_48 {dimension_numbers = #tpu.dot_dimension_numbers<[1], [0], [0], [1], [0, 0, 1, 1], [], []>} : vector<1x256xf32>, vector<256x32xf32>, vector<1x32xf32> -> vector<1x32xf32>
    %49 = arith.addf %46, %48 : vector<1x32xf32>
    %c0_49 = arith.constant 0 : index
    %c0_50 = arith.constant 0 : index
    %50 = vector.load %arg8[%c0_49, %c0_50] : memref<1x32xf32, #tpu.memory_space<vmem>>, vector<1x32xf32>
    %51 = arith.addf %49, %50 : vector<1x32xf32>
    %cst_51 = arith.constant 0.000000e+00 : f32
    %52 = vector.broadcast %cst_51 : f32 to vector<1x32xf32>
    %53 = arith.maximumf %51, %52 : vector<1x32xf32>
    %c0_52 = arith.constant 0 : index
    %c0_53 = arith.constant 0 : index
    %54 = vector.load %arg9[%c0_52, %c0_53] : memref<32x128xf32, #tpu.memory_space<vmem>>, vector<32x128xf32>
    %cst_54 = arith.constant dense<0.000000e+00> : vector<1x128xf32>
    %55 = tpu.matmul %53, %54, %cst_54 {dimension_numbers = #tpu.dot_dimension_numbers<[1], [0], [0], [1], [0, 0, 1, 1], [], []>} : vector<1x32xf32>, vector<32x128xf32>, vector<1x128xf32> -> vector<1x128xf32>
    %c0_55 = arith.constant 0 : index
    %c0_56 = arith.constant 0 : index
    %56 = vector.load %arg10[%c0_55, %c0_56] : memref<1x128xf32, #tpu.memory_space<vmem>>, vector<1x128xf32>
    %57 = arith.addf %55, %56 : vector<1x128xf32>
    %c0_57 = arith.constant 0 : index
    %c0_58 = arith.constant 0 : index
    %c0_59 = arith.constant 0 : index
    %58 = vector.load %arg11[%c0_57, %c0_58, %c0_59] : memref<1x1x128xf32, #tpu.memory_space<vmem>>, vector<1x1x128xf32>
    %59 = vector.shape_cast %58 : vector<1x1x128xf32> to vector<1x128xf32>
    %60 = vector.shape_cast %57 : vector<1x128xf32> to vector<1x1x128xf32>
    tpu.vector_store %arg11[%c0_57, %c0_58, %c0_59], %60 {strides = array<i32>} : memref<1x1x128xf32, #tpu.memory_space<vmem>>, vector<1x1x128xf32>,
    return
  }
  func.func @transform_0(%arg0: i32) -> (i32, i32, i32) {
    %c0_i32 = arith.constant 0 : i32
    %c0_i32_0 = arith.constant 0 : i32
    %c0_i32_1 = arith.constant 0 : i32
    return %arg0, %c0_i32, %c0_i32_0 : i32, i32, i32
  }
  func.func @transform_1(%arg0: i32) -> (i32, i32, i32) {
    %c0_i32 = arith.constant 0 : i32
    %c0_i32_0 = arith.constant 0 : i32
    %c0_i32_1 = arith.constant 0 : i32
    return %arg0, %c0_i32, %c0_i32_0 : i32, i32, i32
  }
  func.func @transform_2(%arg0: i32) -> (i32, i32) {
    %c0_i32 = arith.constant 0 : i32
    %c0_i32_0 = arith.constant 0 : i32
    %c0_i32_1 = arith.constant 0 : i32
    return %c0_i32, %c0_i32_0 : i32, i32
  }
  func.func @transform_3(%arg0: i32) -> (i32, i32) {
    %c0_i32 = arith.constant 0 : i32
    %c0_i32_0 = arith.constant 0 : i32
    %c0_i32_1 = arith.constant 0 : i32
    return %c0_i32, %c0_i32_0 : i32, i32
  }
  func.func @transform_4(%arg0: i32) -> (i32, i32) {
    %c0_i32 = arith.constant 0 : i32
    %c0_i32_0 = arith.constant 0 : i32
    %c0_i32_1 = arith.constant 0 : i32
    return %c0_i32, %c0_i32_0 : i32, i32
  }
  func.func @transform_5(%arg0: i32) -> (i32, i32) {
    %c0_i32 = arith.constant 0 : i32
    %c0_i32_0 = arith.constant 0 : i32
    %c0_i32_1 = arith.constant 0 : i32
    return %c0_i32, %c0_i32_0 : i32, i32
  }
  func.func @transform_6(%arg0: i32) -> (i32, i32) {
    %c0_i32 = arith.constant 0 : i32
    %c0_i32_0 = arith.constant 0 : i32
    %c0_i32_1 = arith.constant 0 : i32
    return %c0_i32, %c0_i32_0 : i32, i32
  }
  func.func @transform_7(%arg0: i32) -> (i32, i32) {
    %c0_i32 = arith.constant 0 : i32
    %c0_i32_0 = arith.constant 0 : i32
    %c0_i32_1 = arith.constant 0 : i32
    return %c0_i32, %c0_i32_0 : i32, i32
  }
  func.func @transform_8(%arg0: i32) -> (i32, i32) {
    %c0_i32 = arith.constant 0 : i32
    %c0_i32_0 = arith.constant 0 : i32
    %c0_i32_1 = arith.constant 0 : i32
    return %c0_i32, %c0_i32_0 : i32, i32
  }
  func.func @transform_9(%arg0: i32) -> (i32, i32) {
    %c0_i32 = arith.constant 0 : i32
    %c0_i32_0 = arith.constant 0 : i32
    %c0_i32_1 = arith.constant 0 : i32
    return %c0_i32, %c0_i32_0 : i32, i32
  }
  func.func @transform_10(%arg0: i32) -> (i32, i32, i32) {
    %c0_i32 = arith.constant 0 : i32
    %c0_i32_0 = arith.constant 0 : i32
    %c0_i32_1 = arith.constant 0 : i32
    return %arg0, %c0_i32, %c0_i32_0 : i32, i32, i32
  }
}

</mosaic_0001>

<llo_original>
// kernel: tpu_custom_call.1
$region0: #{tpu_custom_call.1}
  #allocation0 [shape = 'u32[]', space=smem, size = 0x4, offset = 0x4, fixed_abs, tag = 'smem constant byte address 0x4 - core index']
  #allocation1 [shape = 'u32[144,128]{1,0:T(1,128)}', space=vmem, size = 0x12000, scoped, tag = 'internal scratch']
  #allocation2 [shape = 'bf16[1,22,256]{2,1,0:T(8,128)(2,1)}', space=vmem, size = 0x3000, scoped, tag = 'scratch operand']
  %s0 = inlined_call_operand.vmem [shape: bf16[2,16,64], index: 0, kind: input, shape index: {}]
  %s1 = inlined_call_operand.vmem [shape: f32[2,1,16], index: 1, kind: input, shape index: {}]
  %s2 = inlined_call_operand.vmem [shape: bf16[64,256], index: 2, kind: input, shape index: {}]
  %s3 = inlined_call_operand.vmem [shape: f32[1,256], index: 3, kind: input, shape index: {}]
  %s4 = inlined_call_operand.hbm [shape: bf16[1792,256], index: 4, kind: input, shape index: {}]
  %s5 = inlined_call_operand.vmem [shape: f32[1,256], index: 5, kind: input, shape index: {}]
  %s6 = inlined_call_operand.vmem [shape: f32[512,32], index: 6, kind: input, shape index: {}]
  %s7 = inlined_call_operand.vmem [shape: f32[1,32], index: 7, kind: input, shape index: {}]
  %s8 = inlined_call_operand.vmem [shape: f32[32,128], index: 8, kind: input, shape index: {}]
  %s9 = inlined_call_operand.vmem [shape: f32[1,128], index: 9, kind: input, shape index: {}]
  %s10 = inlined_call_operand.hbm [shape: f32[2,1,128], index: 10, kind: output, shape index: {}]
  %s11 = sld [smem:[#allocation0]]
  $region77: #{tpu_custom_call.1} parent=0
    _
  %s13 = ssub.s32 1, %s11
  %s14 = scalar_select 0, %s13, %s11
  $region1: #{tpu_custom_call.1} parent=0
    #allocation3 [shape = 'u8[917504]{0}', space=vmem, size = 0xe0000, scoped, tag = 'input window, operand 4, single buffered']
    #allocation4 [shape = 's32[2]{0}', space=sflag, size = 0x8, scoped, tag = 'scoped memory for tpu_custom_call.1']
    #allocation5 [shape = 's32[2]{0}', space=sflag, size = 0x8, scoped, tag = 'scoped memory for tpu_custom_call.1']
    #allocation6 [shape = 'u8[1024]{0}', space=vmem, size = 0x400, scoped, tag = 'output window, operand 0']
    %15 = vsyncpa [#allocation4], 0
    %16 = vsyncpa [#allocation5], 0
    %s17 = scalar_lea.sflag [#allocation5], 1
    %18 = vsyncpa %s17, 0
    loop: start=0, step=1, limit=4
    $region2: #{tpu_custom_call.1} parent=1 // loop_pre_header
      _
    $region3: #{tpu_custom_call.1} parent=1 // loop_header
      %s20 = sphi 0, %s24
      %p21 = scmp.ge.s32.totalorder %s20, 4
      %s30 = sphi 0, %s32
      %s33 = sphi 0, %s30
      %s34 = sphi 0, %s33
      %s50 = sphi 0, %s34
      %s56 = sphi 0, %s58
      %s59 = sphi 0, %s56
      %s60 = sphi 0, %s59
      %s76 = sphi 0, %s60
      %s80 = sphi 0, %s80
      %s82 = sphi 0, %s80
      %s83 = sphi 0, %s82
      %s97 = sphi 0, %s83
      %s101 = sphi 0, %s101
      %s103 = sphi 0, %s101
      %s104 = sphi 0, %s103
      %s118 = sphi 0, %s104
      %s122 = sphi 0, %s122
      %s124 = sphi 0, %s122
      %s125 = sphi 0, %s124
      %s139 = sphi 0, %s125
      %s143 = sphi 0, %s143
      %s145 = sphi 0, %s143
      %s146 = sphi 0, %s145
      %s160 = sphi 0, %s146
      %s164 = sphi 0, %s164
      %s166 = sphi 0, %s164
      %s167 = sphi 0, %s166
      %s181 = sphi 0, %s167
      %s185 = sphi 0, %s185
      %s187 = sphi 0, %s185
      %s188 = sphi 0, %s187
      %s202 = sphi 0, %s188
      %s206 = sphi 0, %s206
      %s208 = sphi 0, %s206
      %s209 = sphi 0, %s208
      %s223 = sphi 0, %s209
      %s227 = sphi 0, %s227
      %s229 = sphi 0, %s227
      %s230 = sphi 0, %s229
      %s244 = sphi 0, %s230
      %s250 = sphi 0, %s252
      %s253 = sphi 0, %s250
      %s254 = sphi 0, %s253
      %s270 = sphi 0, %s254
    $region4: #{tpu_custom_call.1} parent=1 // loop_header_branch
      %23 = sbr.rel (%p21) target = $region8
    $region5: #{tpu_custom_call.1} parent=1 // loop_body
      %s25 = ssub.s32 %s20, 1
      %s26 = ssub.s32 %s20, 2
      %s27 = sadd.s32 %s20, 1
      %s28 = ssub.s32 %s20, %s27
      %p29 = scmp.eq.s32.totalorder %s28, 0
      %s31 = sadd.s32 %s30, 1
      %s32 = scalar_select %p29, %s30, %s31
      %p35 = pneg %p29
      %p36 = scmp.eq.s32.totalorder %s20, 1
      %p37 = por %p35, %p36
      %p38 = scmp.ne.s32.totalorder %s30, %s33
      %p39 = scmp.eq.s32.totalorder %s20, 0
      %p40 = por %p38, %p39
      %p41 = scmp.ne.s32.totalorder %s30, %s33
      %p42 = scmp.eq.s32.totalorder %s25, 1
      %p43 = por %p41, %p42
      %p44 = scmp.ne.s32.totalorder %s33, %s34
      %p45 = scmp.eq.s32.totalorder %s25, 0
      %p46 = por %p44, %p45
      %p47 = scmp.ne.s32.totalorder %s33, %s34
      %p48 = scmp.eq.s32.totalorder %s26, 1
      %p49 = por %p47, %p48
      %p51 = scmp.ne.s32.totalorder %s34, %s50
      %p52 = scmp.eq.s32.totalorder %s26, 0
      %p53 = por %p51, %p52
      %s54 = ssub.s32 %s20, %s27
      %p55 = scmp.eq.s32.totalorder %s54, 0
      %s57 = sadd.s32 %s56, 1
      %s58 = scalar_select %p55, %s56, %s57
      %p61 = pneg %p55
      %p62 = scmp.eq.s32.totalorder %s20, 1
      %p63 = por %p61, %p62
      %p64 = scmp.ne.s32.totalorder %s56, %s59
      %p65 = scmp.eq.s32.totalorder %s20, 0
      %p66 = por %p64, %p65
      %p67 = scmp.ne.s32.totalorder %s56, %s59
      %p68 = scmp.eq.s32.totalorder %s25, 1
      %p69 = por %p67, %p68
      %p70 = scmp.ne.s32.totalorder %s59, %s60
      %p71 = scmp.eq.s32.totalorder %s25, 0
      %p72 = por %p70, %p71
      %p73 = scmp.ne.s32.totalorder %s59, %s60
      %p74 = scmp.eq.s32.totalorder %s26, 1
      %p75 = por %p73, %p74
      %p77 = scmp.ne.s32.totalorder %s60, %s76
      %p78 = scmp.eq.s32.totalorder %s26, 0
      %p79 = por %p77, %p78
      %s81 = sadd.s32 %s80, 1
      %p84 = scmp.eq.s32.totalorder %s20, 1
      %p85 = scmp.ne.s32.totalorder %s80, %s82
      %p86 = scmp.eq.s32.totalorder %s20, 0
      %p87 = por %p85, %p86
      %p88 = scmp.ne.s32.totalorder %s80, %s82
      %p89 = scmp.eq.s32.totalorder %s25, 1
      %p90 = por %p88, %p89
      %p91 = scmp.ne.s32.totalorder %s82, %s83
      %p92 = scmp.eq.s32.totalorder %s25, 0
      %p93 = por %p91, %p92
      %p94 = scmp.ne.s32.totalorder %s82, %s83
      %p95 = scmp.eq.s32.totalorder %s26, 1
      %p96 = por %p94, %p95
      %p98 = scmp.ne.s32.totalorder %s83, %s97
      %p99 = scmp.eq.s32.totalorder %s26, 0
      %p100 = por %p98, %p99
      %s102 = sadd.s32 %s101, 1
      %p105 = scmp.eq.s32.totalorder %s20, 1
      %p106 = scmp.ne.s32.totalorder %s101, %s103
      %p107 = scmp.eq.s32.totalorder %s20, 0
      %p108 = por %p106, %p107
      %p109 = scmp.ne.s32.totalorder %s101, %s103
      %p110 = scmp.eq.s32.totalorder %s25, 1
      %p111 = por %p109, %p110
      %p112 = scmp.ne.s32.totalorder %s103, %s104
      %p113 = scmp.eq.s32.totalorder %s25, 0
      %p114 = por %p112, %p113
      %p115 = scmp.ne.s32.totalorder %s103, %s104
      %p116 = scmp.eq.s32.totalorder %s26, 1
      %p117 = por %p115, %p116
      %p119 = scmp.ne.s32.totalorder %s104, %s118
      %p120 = scmp.eq.s32.totalorder %s26, 0
      %p121 = por %p119, %p120
      %s123 = sadd.s32 %s122, 1
      %p126 = scmp.eq.s32.totalorder %s20, 1
      %p127 = scmp.ne.s32.totalorder %s122, %s124
      %p128 = scmp.eq.s32.totalorder %s20, 0
      %p129 = por %p127, %p128
      %p130 = scmp.ne.s32.totalorder %s122, %s124
      %p131 = scmp.eq.s32.totalorder %s25, 1
      %p132 = por %p130, %p131
      %p133 = scmp.ne.s32.totalorder %s124, %s125
      %p134 = scmp.eq.s32.totalorder %s25, 0
      %p135 = por %p133, %p134
      %p136 = scmp.ne.s32.totalorder %s124, %s125
      %p137 = scmp.eq.s32.totalorder %s26, 1
      %p138 = por %p136, %p137
      %p140 = scmp.ne.s32.totalorder %s125, %s139
      %p141 = scmp.eq.s32.totalorder %s26, 0
      %p142 = por %p140, %p141
      %s144 = sadd.s32 %s143, 1
      %p147 = scmp.eq.s32.totalorder %s20, 1
      %p148 = scmp.ne.s32.totalorder %s143, %s145
      %p149 = scmp.eq.s32.totalorder %s20, 0
      %p150 = por %p148, %p149
      %p151 = scmp.ne.s32.totalorder %s143, %s145
      %p152 = scmp.eq.s32.totalorder %s25, 1
      %p153 = por %p151, %p152
      %p154 = scmp.ne.s32.totalorder %s145, %s146
      %p155 = scmp.eq.s32.totalorder %s25, 0
      %p156 = por %p154, %p155
      %p157 = scmp.ne.s32.totalorder %s145, %s146
      %p158 = scmp.eq.s32.totalorder %s26, 1
      %p159 = por %p157, %p158
      %p161 = scmp.ne.s32.totalorder %s146, %s160
      %p162 = scmp.eq.s32.totalorder %s26, 0
      %p163 = por %p161, %p162
      %s165 = sadd.s32 %s164, 1
      %p168 = scmp.eq.s32.totalorder %s20, 1
      %p169 = scmp.ne.s32.totalorder %s164, %s166
      %p170 = scmp.eq.s32.totalorder %s20, 0
      %p171 = por %p169, %p170
      %p172 = scmp.ne.s32.totalorder %s164, %s166
      %p173 = scmp.eq.s32.totalorder %s25, 1
      %p174 = por %p172, %p173
      %p175 = scmp.ne.s32.totalorder %s166, %s167
      %p176 = scmp.eq.s32.totalorder %s25, 0
      %p177 = por %p175, %p176
      %p178 = scmp.ne.s32.totalorder %s166, %s167
      %p179 = scmp.eq.s32.totalorder %s26, 1
      %p180 = por %p178, %p179
      %p182 = scmp.ne.s32.totalorder %s167, %s181
      %p183 = scmp.eq.s32.totalorder %s26, 0
      %p184 = por %p182, %p183
      %s186 = sadd.s32 %s185, 1
      %p189 = scmp.eq.s32.totalorder %s20, 1
      %p190 = scmp.ne.s32.totalorder %s185, %s187
      %p191 = scmp.eq.s32.totalorder %s20, 0
      %p192 = por %p190, %p191
      %p193 = scmp.ne.s32.totalorder %s185, %s187
      %p194 = scmp.eq.s32.totalorder %s25, 1
      %p195 = por %p193, %p194
      %p196 = scmp.ne.s32.totalorder %s187, %s188
      %p197 = scmp.eq.s32.totalorder %s25, 0
      %p198 = por %p196, %p197
      %p199 = scmp.ne.s32.totalorder %s187, %s188
      %p200 = scmp.eq.s32.totalorder %s26, 1
      %p201 = por %p199, %p200
      %p203 = scmp.ne.s32.totalorder %s188, %s202
      %p204 = scmp.eq.s32.totalorder %s26, 0
      %p205 = por %p203, %p204
      %s207 = sadd.s32 %s206, 1
      %p210 = scmp.eq.s32.totalorder %s20, 1
      %p211 = scmp.ne.s32.totalorder %s206, %s208
      %p212 = scmp.eq.s32.totalorder %s20, 0
      %p213 = por %p211, %p212
      %p214 = scmp.ne.s32.totalorder %s206, %s208
      %p215 = scmp.eq.s32.totalorder %s25, 1
      %p216 = por %p214, %p215
      %p217 = scmp.ne.s32.totalorder %s208, %s209
      %p218 = scmp.eq.s32.totalorder %s25, 0
      %p219 = por %p217, %p218
      %p220 = scmp.ne.s32.totalorder %s208, %s209
      %p221 = scmp.eq.s32.totalorder %s26, 1
      %p222 = por %p220, %p221
      %p224 = scmp.ne.s32.totalorder %s209, %s223
      %p225 = scmp.eq.s32.totalorder %s26, 0
      %p226 = por %p224, %p225
      %s228 = sadd.s32 %s227, 1
      %p231 = scmp.eq.s32.totalorder %s20, 1
      %p232 = scmp.ne.s32.totalorder %s227, %s229
      %p233 = scmp.eq.s32.totalorder %s20, 0
      %p234 = por %p232, %p233
      %p235 = scmp.ne.s32.totalorder %s227, %s229
      %p236 = scmp.eq.s32.totalorder %s25, 1
      %p237 = por %p235, %p236
      %p238 = scmp.ne.s32.totalorder %s229, %s230
      %p239 = scmp.eq.s32.totalorder %s25, 0
      %p240 = por %p238, %p239
      %p241 = scmp.ne.s32.totalorder %s229, %s230
      %p242 = scmp.eq.s32.totalorder %s26, 1
      %p243 = por %p241, %p242
      %p245 = scmp.ne.s32.totalorder %s230, %s244
      %p246 = scmp.eq.s32.totalorder %s26, 0
      %p247 = por %p245, %p246
      %s248 = ssub.s32 %s20, %s27
      %p249 = scmp.eq.s32.totalorder %s248, 0
      %s251 = sadd.s32 %s250, 1
      %s252 = scalar_select %p249, %s250, %s251
      %p255 = pneg %p249
      %p256 = scmp.eq.s32.totalorder %s20, 1
      %p257 = por %p255, %p256
      %p258 = scmp.ne.s32.totalorder %s250, %s253
      %p259 = scmp.eq.s32.totalorder %s20, 0
      %p260 = por %p258, %p259
      %p261 = scmp.ne.s32.totalorder %s250, %s253
      %p262 = scmp.eq.s32.totalorder %s25, 1
      %p263 = por %p261, %p262
      %p264 = scmp.ne.s32.totalorder %s253, %s254
      %p265 = scmp.eq.s32.totalorder %s25, 0
      %p266 = por %p264, %p265
      %p267 = scmp.ne.s32.totalorder %s253, %s254
      %p268 = scmp.eq.s32.totalorder %s26, 1
      %p269 = por %p267, %p268
      %p271 = scmp.ne.s32.totalorder %s254, %s270
      %p272 = scmp.eq.s32.totalorder %s26, 0
      %p273 = por %p271, %p272
      %p274 = scmp.le.s32.totalorder 1, %s20
      %p275 = scmp.lt.s32.totalorder %s20, 3
      %p276 = pnand %p274, %p275
      %p277 = pneg %p276
      // Predicated region
      $region9: #{tpu_custom_call.1} parent=5 // pred_check
        _
      $region10: #{tpu_custom_call.1} parent=5 // pred_check_branch
        %279 = sbr.rel (%p276) target = $region12
      $region11: #{tpu_custom_call.1} parent=5 // pred_region
        %s280 = ssub.s32 %s20, 1
        // Predicated region
        $region13: #{tpu_custom_call.1} parent=11 // pred_check
          %p281 = pneg %p93
        $region14: #{tpu_custom_call.1} parent=11 // pred_check_branch
          %283 = sbr.rel (%p281) target = $region16
        $region15: #{tpu_custom_call.1} parent=11 // pred_region
          _
        $region16: #{tpu_custom_call.1} parent=11 // pred_fallthru
          _
        // Predicated region
        $region17: #{tpu_custom_call.1} parent=11 // pred_check
          %p284 = pneg %p114
        $region18: #{tpu_custom_call.1} parent=11 // pred_check_branch
          %286 = sbr.rel (%p284) target = $region20
        $region19: #{tpu_custom_call.1} parent=11 // pred_region
          _
        $region20: #{tpu_custom_call.1} parent=11 // pred_fallthru
          _
        // Predicated region
        $region21: #{tpu_custom_call.1} parent=11 // pred_check
          %p287 = pneg %p135
        $region22: #{tpu_custom_call.1} parent=11 // pred_check_branch
          %289 = sbr.rel (%p287) target = $region24
        $region23: #{tpu_custom_call.1} parent=11 // pred_region
          %s291 = ssub.s32 28672, 28672
          %292 = vsyncadd [#allocation4], %s291
          %s293 = sshll.u32 [#allocation3], 4
          %s294 = int_to_ptr.vmem [resolvable:$true] %s293
          %299 = dma.hbm_to_vmem [thread:$0]  %s4, 28672, %s294, [#allocation4], 128, 128, 8
        $region24: #{tpu_custom_call.1} parent=11 // pred_fallthru
          _
        // Predicated region
        $region25: #{tpu_custom_call.1} parent=11 // pred_check
          %p300 = pneg %p156
        $region26: #{tpu_custom_call.1} parent=11 // pred_check_branch
          %302 = sbr.rel (%p300) target = $region28
        $region27: #{tpu_custom_call.1} parent=11 // pred_region
          _
        $region28: #{tpu_custom_call.1} parent=11 // pred_fallthru
          _
        // Predicated region
        $region29: #{tpu_custom_call.1} parent=11 // pred_check
          %p303 = pneg %p177
        $region30: #{tpu_custom_call.1} parent=11 // pred_check_branch
          %305 = sbr.rel (%p303) target = $region32
        $region31: #{tpu_custom_call.1} parent=11 // pred_region
          _
        $region32: #{tpu_custom_call.1} parent=11 // pred_fallthru
          _
        // Predicated region
        $region33: #{tpu_custom_call.1} parent=11 // pred_check
          %p306 = pneg %p198
        $region34: #{tpu_custom_call.1} parent=11 // pred_check_branch
          %308 = sbr.rel (%p306) target = $region36
        $region35: #{tpu_custom_call.1} parent=11 // pred_region
          _
        $region36: #{tpu_custom_call.1} parent=11 // pred_fallthru
          _
        // Predicated region
        $region37: #{tpu_custom_call.1} parent=11 // pred_check
          %p309 = pneg %p219
        $region38: #{tpu_custom_call.1} parent=11 // pred_check_branch
          %311 = sbr.rel (%p309) target = $region40
        $region39: #{tpu_custom_call.1} parent=11 // pred_region
          _
        $region40: #{tpu_custom_call.1} parent=11 // pred_fallthru
          _
        // Predicated region
        $region41: #{tpu_custom_call.1} parent=11 // pred_check
          %p312 = pneg %p240
        $region42: #{tpu_custom_call.1} parent=11 // pred_check_branch
          %314 = sbr.rel (%p312) target = $region44
        $region43: #{tpu_custom_call.1} parent=11 // pred_region
          _
        $region44: #{tpu_custom_call.1} parent=11 // pred_fallthru
          _
      $region12: #{tpu_custom_call.1} parent=5 // pred_fallthru
        _
      %p315 = scmp.lt.s32.totalorder %s20, 2
      // Predicated region
      $region45: #{tpu_custom_call.1} parent=5 // pred_check
        %p316 = pneg %p315
      $region46: #{tpu_custom_call.1} parent=5 // pred_check_branch
        %318 = sbr.rel (%p316) target = $region48
      $region47: #{tpu_custom_call.1} parent=5 // pred_region
        // Predicated region
        $region49: #{tpu_custom_call.1} parent=47 // pred_check
          %p319 = pneg %p40
        $region50: #{tpu_custom_call.1} parent=47 // pred_check_branch
          %321 = sbr.rel (%p319) target = $region52
        $region51: #{tpu_custom_call.1} parent=47 // pred_region
          %p322 = scmp.lt.s32.totalorder %s20, 1
          %s323 = scalar_select %p322, %s20, 1
          %s324 = smul.addr %s323, 2
          %s325 = smul.addr %s324, 4
          %s326 = scalar_lea.vmem %s0, %s325
        $region52: #{tpu_custom_call.1} parent=47 // pred_fallthru
          _
        // Predicated region
        $region53: #{tpu_custom_call.1} parent=47 // pred_check
          %p327 = pneg %p66
        $region54: #{tpu_custom_call.1} parent=47 // pred_check_branch
          %329 = sbr.rel (%p327) target = $region56
        $region55: #{tpu_custom_call.1} parent=47 // pred_region
          %p330 = scmp.lt.s32.totalorder %s20, 1
          %s331 = scalar_select %p330, %s20, 1
          %s332 = scalar_lea.vmem %s1, %s331
        $region56: #{tpu_custom_call.1} parent=47 // pred_fallthru
          _
      $region48: #{tpu_custom_call.1} parent=5 // pred_fallthru
        _
      %p333 = scmp.le.s32.totalorder 1, %s20
      %p334 = scmp.lt.s32.totalorder %s20, 3
      %p335 = pnand %p333, %p334
      %p336 = pneg %p335
      // Predicated region
      $region57: #{tpu_custom_call.1} parent=5 // pred_check
        _
      $region58: #{tpu_custom_call.1} parent=5 // pred_check_branch
        %338 = sbr.rel (%p335) target = $region60
      $region59: #{tpu_custom_call.1} parent=5 // pred_region
        %s339 = ssub.s32 %s20, 1
        // Predicated region
        $region61: #{tpu_custom_call.1} parent=59 // pred_check
          %p340 = pneg %p135
        $region62: #{tpu_custom_call.1} parent=59 // pred_check_branch
          %342 = sbr.rel (%p340) target = $region64
        $region63: #{tpu_custom_call.1} parent=59 // pred_region
          %343 = dma.done [#allocation4], 28672
        $region64: #{tpu_custom_call.1} parent=59 // pred_fallthru
          _
        %p344 = scmp.lt.s32.totalorder %s25, 1
        %s345 = scalar_select %p344, %s25, 1
        %s346 = smul.addr %s345, 2
        %s347 = smul.addr %s346, 4
        %s348 = scalar_lea.vmem %s0, %s347
        %p349 = pneg %p46
        %p350 = pneg %p43
        %p351 = scmp.lt.s32.totalorder %s25, 1
        %s352 = scalar_select %p351, %s25, 1
        %s353 = scalar_lea.vmem %s1, %s352
        %p354 = pneg %p72
        %p355 = pneg %p69
        %p356 = pneg %p93
        %p357 = pneg %p90
        %p358 = pneg %p114
        %p359 = pneg %p111
        %p360 = pneg %p135
        %p361 = pneg %p132
        %p362 = pneg %p156
        %p363 = pneg %p153
        %p364 = pneg %p177
        %p365 = pneg %p174
        %p366 = pneg %p198
        %p367 = pneg %p195
        %p368 = pneg %p219
        %p369 = pneg %p216
        %p370 = pneg %p240
        %p371 = pneg %p237
        %p372 = pneg %p266
        %p373 = pneg %p263
        %s374 = sand.u32 %s253, 1
        %s375 = scalar_lea.sflag [#allocation5], %s374
        %s376 = sand.u32 %s253, 1
        %s377 = scalar_lea.vmem [#allocation6], %s376
        %p378 = scmp.lt.s32.totalorder %s25, 1
        %s379 = scalar_select %p378, %s25, 1
        %s380 = smul.addr %s379, 2
        %s381 = smul.addr %s380, 4
        %s382 = scalar_lea.vmem %s0, %s381
        %p383 = scmp.lt.s32.totalorder %s25, 1
        %s384 = scalar_select %p383, %s25, 1
        %s385 = scalar_lea.vmem %s1, %s384
        %v387 = vld [vmem:[%s382] sm:$0xf]
        %v388 = vld [vmem:[%s382 + $0x4] sm:$0xf]
        %v389 = vld [vmem:[%s2] sm:$0xff]
        %v390 = vld [vmem:[%s2 + $0x8] sm:$0xff]
        %v391 = vld [vmem:[%s2 + $0x10] sm:$0xff]
        %v392 = vld [vmem:[%s2 + $0x18] sm:$0xff]
        %v393 = vld [vmem:[%s2 + $0x20] sm:$0xff]
        %v394 = vld [vmem:[%s2 + $0x28] sm:$0xff]
        %v395 = vld [vmem:[%s2 + $0x30] sm:$0xff]
        %v396 = vld [vmem:[%s2 + $0x38] sm:$0xff]
        %v397 = vld [vmem:[%s3] sm:$0x3]
        %v399 = vlaneseq
        %v400 = vshrl.u32 %v399, 7
        %v401 = vsub.s32 0, %v400
        %v402 = vrot.slane %v397, %v401
        %v403 = vlaneseq
        %v404 = vshrl.u32 %v403, 7
        %v405 = vsub.s32 1, %v404
        %v406 = vrot.slane %v397, %v405
        %v411 = vunpack.c.l.b16 %v387
        %v412 = vunpack.c.l.b16 %v388
        %v413 = vpack.c.b16 %v412, %v411
        %v422 = vunpack.c.l.b16 %v389
        %v423 = vunpack.c.h.b16 %v389
        %v424 = vunpack.c.l.b16 %v390
        %v425 = vunpack.c.h.b16 %v390
        %v426 = vunpack.c.l.b16 %v391
        %v427 = vunpack.c.h.b16 %v391
        %v428 = vunpack.c.l.b16 %v392
        %v429 = vunpack.c.h.b16 %v392
        %v430 = vunpack.c.l.b16 %v393
        %v431 = vunpack.c.h.b16 %v393
        %v432 = vunpack.c.l.b16 %v394
        %v433 = vunpack.c.h.b16 %v394
        %v434 = vunpack.c.l.b16 %v395
        %v435 = vunpack.c.h.b16 %v395
        %v436 = vunpack.c.l.b16 %v396
        %v437 = vunpack.c.h.b16 %v396
        %v438 = vpack.c.b16 %v424, %v422
        %v439 = vpack.c.b16 %v425, %v423
        %v440 = vpack.c.b16 %v428, %v426
        %v441 = vpack.c.b16 %v429, %v427
        %v442 = vpack.c.b16 %v432, %v430
        %v443 = vpack.c.b16 %v433, %v431
        %v444 = vpack.c.b16 %v436, %v434
        %v445 = vpack.c.b16 %v437, %v435
        %vm454 = vcmask 523264
        %v456 = vsel %vm454, %v413, 0
        %458 = vmatprep.subr.bf16.mxu0 %v439
        %459 = vmatpush1.bf16.msra.mxu0 %v438
        %460 = vmatprep.subr.bf16.mxu0 %v441
        %461 = vmatpush1.bf16.msra.mxu0 %v440
        %462 = vmatprep.subr.bf16.mxu0 %v443
        %463 = vmatpush1.bf16.msra.mxu0 %v442
        %464 = vmatprep.subr.bf16.mxu0 %v445
        %465 = vmatpush1.bf16.msra.mxu0 %v444
        %466 = vmatprep.subr.bf16.mxu0 0
        %467 = vmatpush1.bf16.msra.mxu0 0
        %468 = vmatprep.subr.bf16.mxu0 0
        %469 = vmatpush1.bf16.msra.mxu0 0
        %470 = vmatprep.subr.bf16.mxu0 0
        %471 = vmatpush1.bf16.msra.mxu0 0
        %472 = vmatprep.subr.bf16.mxu0 0
        %473 = vmatpush1.bf16.msra.mxu0 0
        %474 = vmatprep.subr.bf16.mxu0 0
        %475 = vmatpush1.bf16.msra.mxu0 0
        %476 = vmatprep.subr.bf16.mxu0 0
        %477 = vmatpush1.bf16.msra.mxu0 0
        %478 = vmatprep.subr.bf16.mxu0 0
        %479 = vmatpush1.bf16.msra.mxu0 0
        %480 = vmatprep.subr.bf16.mxu0 0
        %481 = vmatpush1.bf16.msra.mxu0 0
        %482 = vmatprep.subr.bf16.mxu0 0
        %483 = vmatpush1.bf16.msra.mxu0 0
        %484 = vmatprep.subr.bf16.mxu0 0
        %485 = vmatpush1.bf16.msra.mxu0 0
        %486 = vmatprep.subr.bf16.mxu0 0
        %487 = vmatpush1.bf16.msra.mxu0 0
        %488 = vmatprep.subr.bf16.mxu0 0
        %489 = vmatpush1.bf16.msra.mxu0 0
        %490 = vmatprep.mubr.bf16.mxu0 0
        %491 = vmatmul.mubr.bf16.gmra.mrb[0].mxu0 %v456
        %v492 = vpop.f32.mrb[0].mxu0
        %v493 = vadd.f32 %v402, %v492
        %v494 = vpop.f32.mrb[0].mxu0
        %v495 = vadd.f32 %v406, %v494
        %v496 = vpop.f32.mrb[0].mxu0
        %v497 = vadd.f32 %v402, %v496
        %v498 = vpop.f32.mrb[0].mxu0
        %v499 = vadd.f32 %v406, %v498
        %500 = vdwg.mxu0
        %v501 = vmax.f32 %v493, 0.0
        %v502 = vmax.f32 %v495, 0.0
        %v503 = vmax.f32 %v497, 0.0
        %v504 = vmax.f32 %v499, 0.0
        %v505 = vpack.c.bf16 %v503, %v501
        %v506 = vpack.c.bf16 %v504, %v502
        %vm507 = vcmask 1041408
        %vm508 = vsmask.f32 1280
        %vm509 = vmand %vm507, %vm508
        %vm510 = vcmask 1045508
        %vm511 = vsmask.f32 5376
        %vm512 = vmand %vm510, %vm511
        %vm513 = vmor %vm512, %vm509
        %v514 = vld [vmem:[#allocation2] sm:$0x33]
        %v515 = vsel %vm513, 0, %v514
        %516 = vst [vmem:[#allocation2] sm:$0x33] %v515
        %vm517 = vcmask 1042433
        %vm518 = vsmask.f32 7942
        %vm519 = vmand %vm517, %vm518
        %vm520 = vcmask 1046533
        %vm521 = vsmask.f32 7958
        %vm522 = vmand %vm520, %vm521
        %vm523 = vmor %vm522, %vm519
        %v524 = vld [vmem:[#allocation2 + $0x10] sm:$0x66]
        %v525 = vsel %vm523, 0, %v524
        %526 = vst [vmem:[#allocation2 + $0x10] sm:$0x66] %v525
        %v529 = vunpack.c.l.b16 %v505
        %v530 = vunpack.c.l.b16 %v506
        %v531 = vunpack.c.h.b16 %v505
        %v532 = vunpack.c.h.b16 %v506
        %v533 = vpack.c.b16 %v530, %v529
        %v534 = vpack.c.b16 %v532, %v531
        %vm535 = vsmask.f32 5392
        %vm536 = vmor %vm508, %vm535
        %v538 = vshrl.u32 %v533, 16
        %v540 = vrot.slane %v538, 6
        %v541 = vshll.u32 %v533, 16
        %v543 = vrot.slane %v541, 7
        %v544 = vor.u32 %v540, %v543
        %v545 = vrot.slane %v544, 4
        %v547 = vshrl.u32 %v534, 16
        %v549 = vrot.slane %v547, 6
        %v550 = vshll.u32 %v534, 16
        %v552 = vrot.slane %v550, 7
        %v553 = vor.u32 %v549, %v552
        %v554 = vsel %vm536, %v545, %v553
        %v555 = vrot.slane %v553, 4
        %vm559 = vcmask 1043457
        %vm560 = vmand %vm559, %vm518
        %vm561 = vcmask 1047557
        %vm562 = vmand %vm561, %vm521
        %vm563 = vmor %vm562, %vm560
        %v564 = vld [vmem:[#allocation2] sm:$0xee]
        %v565 = vsel %vm563, %v544, %v564
        %566 = vst [vmem:[#allocation2] sm:$0xee] %v565
        %567 = vst [vmem:[#allocation2 + $0x8] sm:$0xff] %v554
        %v568 = vld [vmem:[#allocation2 + $0x10] sm:$0x33]
        %v569 = vsel %vm513, %v555, %v568
        %570 = vst [vmem:[#allocation2 + $0x10] sm:$0x33] %v569
        %v571 = vld [vmem:[#allocation2] sm:$0xff]
        %v572 = vld [vmem:[#allocation2 + $0x8] sm:$0xff]
        %v573 = vld [vmem:[#allocation2 + $0x10] sm:$0x11]
        %v574 = vld [vmem:[#allocation2] sm:$0xee]
        %v575 = vld [vmem:[#allocation2 + $0x10] sm:$0x33]
        %v576 = vld [vmem:[#allocation2] sm:$0xcc]
        %v577 = vld [vmem:[#allocation2 + $0x10] sm:$0x77]
        %v578 = vld [vmem:[#allocation2] sm:$0x88]
        %v581 = vunpack.c.l.b16 %v571
        %v582 = vunpack.c.h.b16 %v571
        %v583 = vunpack.c.l.b16 %v572
        %v584 = vunpack.c.h.b16 %v572
        %v585 = vpack.c.b16 %v583, %v581
        %v586 = vpack.c.b16 %v584, %v582
        %v590 = vunpack.c.l.b16 %v573
        %v591 = vunpack.c.h.b16 %v573
        %v592 = vpack.c.b16 %v590, %v590
        %v593 = vpack.c.b16 %v591, %v591
        %vm594 = vsmask.f32 7424
        %v596 = vshrl.u32 %v585, 16
        %v598 = vshll.u32 %v585, 16
        %v600 = vrot.slane %v598, 1
        %v601 = vor.u32 %v596, %v600
        %v603 = vshll.u32 %v592, 16
        %v605 = vrot.slane %v603, 1
        %v606 = vsel %vm594, %v601, %v605
        %v608 = vshrl.u32 %v586, 16
        %v610 = vshll.u32 %v586, 16
        %v612 = vrot.slane %v610, 1
        %v613 = vor.u32 %v608, %v612
        %v615 = vshll.u32 %v593, 16
        %v617 = vrot.slane %v615, 1
        %v618 = vsel %vm594, %v613, %v617
        %v622 = vunpack.c.l.b16 %v574
        %v623 = vunpack.c.h.b16 %v574
        %v624 = vpack.c.b16 %v583, %v622
        %v625 = vpack.c.b16 %v584, %v623
        %vm626 = vcmask 1046528
        %v627 = vrot.slane %v624, 1
        %v628 = vrot.slane %v592, 1
        %v629 = vsel %vm626, %v627, %v628
        %v630 = vrot.slane %v625, 1
        %v631 = vrot.slane %v593, 1
        %v632 = vsel %vm626, %v630, %v631
        %v636 = vunpack.c.l.b16 %v575
        %v637 = vunpack.c.h.b16 %v575
        %v638 = vpack.c.b16 %v636, %v636
        %v639 = vpack.c.b16 %v637, %v637
        %vm640 = vsmask.f32 6400
        %v642 = vshrl.u32 %v624, 16
        %v644 = vrot.slane %v642, 1
        %v645 = vshll.u32 %v624, 16
        %v647 = vrot.slane %v645, 2
        %v648 = vor.u32 %v644, %v647
        %v650 = vshrl.u32 %v638, 16
        %v652 = vrot.slane %v650, 1
        %v653 = vshll.u32 %v638, 16
        %v655 = vrot.slane %v653, 2
        %v656 = vor.u32 %v652, %v655
        %v657 = vsel %vm640, %v648, %v656
        %v659 = vshrl.u32 %v625, 16
        %v661 = vrot.slane %v659, 1
        %v662 = vshll.u32 %v625, 16
        %v664 = vrot.slane %v662, 2
        %v665 = vor.u32 %v661, %v664
        %v667 = vshrl.u32 %v639, 16
        %v669 = vrot.slane %v667, 1
        %v670 = vshll.u32 %v639, 16
        %v672 = vrot.slane %v670, 2
        %v673 = vor.u32 %v669, %v672
        %v674 = vsel %vm640, %v665, %v673
        %v678 = vunpack.c.l.b16 %v576
        %v679 = vunpack.c.h.b16 %v576
        %v680 = vpack.c.b16 %v583, %v678
        %v681 = vpack.c.b16 %v584, %v679
        %vm682 = vcmask 1045504
        %v683 = vrot.slane %v680, 2
        %v684 = vrot.slane %v638, 2
        %v685 = vsel %vm682, %v683, %v684
        %v686 = vrot.slane %v681, 2
        %v687 = vrot.slane %v639, 2
        %v688 = vsel %vm682, %v686, %v687
        %v692 = vunpack.c.l.b16 %v577
        %v693 = vunpack.c.h.b16 %v577
        %v694 = vpack.c.b16 %v692, %v692
        %v695 = vpack.c.b16 %v693, %v693
        %v697 = vshrl.u32 %v680, 16
        %v699 = vrot.slane %v697, 2
        %v700 = vshll.u32 %v680, 16
        %v702 = vrot.slane %v700, 3
        %v703 = vor.u32 %v699, %v702
        %v705 = vshrl.u32 %v694, 16
        %v707 = vrot.slane %v705, 2
        %v708 = vshll.u32 %v694, 16
        %v710 = vrot.slane %v708, 3
        %v711 = vor.u32 %v707, %v710
        %v712 = vsel %vm511, %v703, %v711
        %v714 = vshrl.u32 %v681, 16
        %v716 = vrot.slane %v714, 2
        %v717 = vshll.u32 %v681, 16
        %v719 = vrot.slane %v717, 3
        %v720 = vor.u32 %v716, %v719
        %v722 = vshrl.u32 %v695, 16
        %v724 = vrot.slane %v722, 2
        %v725 = vshll.u32 %v695, 16
        %v727 = vrot.slane %v725, 3
        %v728 = vor.u32 %v724, %v727
        %v729 = vsel %vm511, %v720, %v728
        %v733 = vunpack.c.l.b16 %v578
        %v734 = vunpack.c.h.b16 %v578
        %v735 = vpack.c.b16 %v583, %v733
        %v736 = vpack.c.b16 %v584, %v734
        %vm737 = vcmask 1044480
        %v738 = vrot.slane %v735, 3
        %v739 = vrot.slane %v694, 3
        %v740 = vsel %vm737, %v738, %v739
        %v741 = vrot.slane %v736, 3
        %v742 = vrot.slane %v695, 3
        %v743 = vsel %vm737, %v741, %v742
        %v746 = vld [vmem:[#allocation3] sm:$0xff]
        %v747 = vld [vmem:[#allocation3 + $0x8] sm:$0xff]
        %v748 = vld [vmem:[#allocation3 + $0x10] sm:$0xff]
        %v749 = vld [vmem:[#allocation3 + $0x18] sm:$0xff]
        %v750 = vld [vmem:[#allocation3 + $0x20] sm:$0xff]
        %v751 = vld [vmem:[#allocation3 + $0x28] sm:$0xff]
        %v752 = vld [vmem:[#allocation3 + $0x30] sm:$0xff]
        %v753 = vld [vmem:[#allocation3 + $0x38] sm:$0xff]
        %v754 = vld [vmem:[#allocation3 + $0x40] sm:$0xff]
        %v755 = vld [vmem:[#allocation3 + $0x48] sm:$0xff]
        %v756 = vld [vmem:[#allocation3 + $0x50] sm:$0xff]
        %v757 = vld [vmem:[#allocation3 + $0x58] sm:$0xff]
        %v758 = vld [vmem:[#allocation3 + $0x60] sm:$0xff]
        %v759 = vld [vmem:[#allocation3 + $0x68] sm:$0xff]
        %v760 = vld [vmem:[#allocation3 + $0x70] sm:$0xff]
        %v761 = vld [vmem:[#allocation3 + $0x78] sm:$0xff]
        %v762 = vld [vmem:[#allocation3 + $0x80] sm:$0xff]
        %v763 = vld [vmem:[#allocation3 + $0x88] sm:$0xff]
        %v764 = vld [vmem:[#allocation3 + $0x90] sm:$0xff]
        %v765 = vld [vmem:[#allocation3 + $0x98] sm:$0xff]
        %v766 = vld [vmem:[#allocation3 + $0xa0] sm:$0xff]
        %v767 = vld [vmem:[#allocation3 + $0xa8] sm:$0xff]
        %v768 = vld [vmem:[#allocation3 + $0xb0] sm:$0xff]
        %v769 = vld [vmem:[#allocation3 + $0xb8] sm:$0xff]
        %v770 = vld [vmem:[#allocation3 + $0xc0] sm:$0xff]
        %v771 = vld [vmem:[#allocation3 + $0xc8] sm:$0xff]
        %v772 = vld [vmem:[#allocation3 + $0xd0] sm:$0xff]
        %v773 = vld [vmem:[#allocation3 + $0xd8] sm:$0xff]
        %v774 = vld [vmem:[#allocation3 + $0xe0] sm:$0xff]
        %v775 = vld [vmem:[#allocation3 + $0xe8] sm:$0xff]
        %v776 = vld [vmem:[#allocation3 + $0xf0] sm:$0xff]
        %v777 = vld [vmem:[#allocation3 + $0xf8] sm:$0xff]
        %v778 = vld [vmem:[#allocation3 + $0x100] sm:$0xff]
        %v779 = vld [vmem:[#allocation3 + $0x108] sm:$0xff]
        %v780 = vld [vmem:[#allocation3 + $0x110] sm:$0xff]
        %v781 = vld [vmem:[#allocation3 + $0x118] sm:$0xff]
        %v782 = vld [vmem:[#allocation3 + $0x120] sm:$0xff]
        %v783 = vld [vmem:[#allocation3 + $0x128] sm:$0xff]
        %v784 = vld [vmem:[#allocation3 + $0x130] sm:$0xff]
        %v785 = vld [vmem:[#allocation3 + $0x138] sm:$0xff]
        %v786 = vld [vmem:[#allocation3 + $0x140] sm:$0xff]
        %v787 = vld [vmem:[#allocation3 + $0x148] sm:$0xff]
        %v788 = vld [vmem:[#allocation3 + $0x150] sm:$0xff]
        %v789 = vld [vmem:[#allocation3 + $0x158] sm:$0xff]
        %v790 = vld [vmem:[#allocation3 + $0x160] sm:$0xff]
        %v791 = vld [vmem:[#allocation3 + $0x168] sm:$0xff]
        %v792 = vld [vmem:[#allocation3 + $0x170] sm:$0xff]
        %v793 = vld [vmem:[#allocation3 + $0x178] sm:$0xff]
        %v794 = vld [vmem:[#allocation3 + $0x180] sm:$0xff]
        %v795 = vld [vmem:[#allocation3 + $0x188] sm:$0xff]
        %v796 = vld [vmem:[#allocation3 + $0x190] sm:$0xff]
        %v797 = vld [vmem:[#allocation3 + $0x198] sm:$0xff]
        %v798 = vld [vmem:[#allocation3 + $0x1a0] sm:$0xff]
        %v799 = vld [vmem:[#allocation3 + $0x1a8] sm:$0xff]
        %v800 = vld [vmem:[#allocation3 + $0x1b0] sm:$0xff]
        %v801 = vld [vmem:[#allocation3 + $0x1b8] sm:$0xff]
        %v802 = vld [vmem:[#allocation3 + $0x1c0] sm:$0xff]
        %v803 = vld [vmem:[#allocation3 + $0x1c8] sm:$0xff]
        %v804 = vld [vmem:[#allocation3 + $0x1d0] sm:$0xff]
        %v805 = vld [vmem:[#allocation3 + $0x1d8] sm:$0xff]
        %v806 = vld [vmem:[#allocation3 + $0x1e0] sm:$0xff]
        %v807 = vld [vmem:[#allocation3 + $0x1e8] sm:$0xff]
        %v808 = vld [vmem:[#allocation3 + $0x1f0] sm:$0xff]
        %v809 = vld [vmem:[#allocation3 + $0x1f8] sm:$0xff]
        %v810 = vld [vmem:[#allocation3 + $0x200] sm:$0xff]
        %v811 = vld [vmem:[#allocation3 + $0x208] sm:$0xff]
        %v812 = vld [vmem:[#allocation3 + $0x210] sm:$0xff]
        %v813 = vld [vmem:[#allocation3 + $0x218] sm:$0xff]
        %v814 = vld [vmem:[#allocation3 + $0x220] sm:$0xff]
        %v815 = vld [vmem:[#allocation3 + $0x228] sm:$0xff]
        %v816 = vld [vmem:[#allocation3 + $0x230] sm:$0xff]
        %v817 = vld [vmem:[#allocation3 + $0x238] sm:$0xff]
        %v818 = vld [vmem:[#allocation3 + $0x240] sm:$0xff]
        %v819 = vld [vmem:[#allocation3 + $0x248] sm:$0xff]
        %v820 = vld [vmem:[#allocation3 + $0x250] sm:$0xff]
        %v821 = vld [vmem:[#allocation3 + $0x258] sm:$0xff]
        %v822 = vld [vmem:[#allocation3 + $0x260] sm:$0xff]
        %v823 = vld [vmem:[#allocation3 + $0x268] sm:$0xff]
        %v824 = vld [vmem:[#allocation3 + $0x270] sm:$0xff]
        %v825 = vld [vmem:[#allocation3 + $0x278] sm:$0xff]
        %v826 = vld [vmem:[#allocation3 + $0x280] sm:$0xff]
        %v827 = vld [vmem:[#allocation3 + $0x288] sm:$0xff]
        %v828 = vld [vmem:[#allocation3 + $0x290] sm:$0xff]
        %v829 = vld [vmem:[#allocation3 + $0x298] sm:$0xff]
        %v830 = vld [vmem:[#allocation3 + $0x2a0] sm:$0xff]
        %v831 = vld [vmem:[#allocation3 + $0x2a8] sm:$0xff]
        %v832 = vld [vmem:[#allocation3 + $0x2b0] sm:$0xff]
        %v833 = vld [vmem:[#allocation3 + $0x2b8] sm:$0xff]
        %v834 = vld [vmem:[#allocation3 + $0x2c0] sm:$0xff]
        %v835 = vld [vmem:[#allocation3 + $0x2c8] sm:$0xff]
        %v836 = vld [vmem:[#allocation3 + $0x2d0] sm:$0xff]
        %v837 = vld [vmem:[#allocation3 + $0x2d8] sm:$0xff]
        %v838 = vld [vmem:[#allocation3 + $0x2e0] sm:$0xff]
        %v839 = vld [vmem:[#allocation3 + $0x2e8] sm:$0xff]
        %v840 = vld [vmem:[#allocation3 + $0x2f0] sm:$0xff]
        %v841 = vld [vmem:[#allocation3 + $0x2f8] sm:$0xff]
        %v842 = vld [vmem:[#allocation3 + $0x300] sm:$0xff]
        %v843 = vld [vmem:[#allocation3 + $0x308] sm:$0xff]
        %v844 = vld [vmem:[#allocation3 + $0x310] sm:$0xff]
        %v845 = vld [vmem:[#allocation3 + $0x318] sm:$0xff]
        %v846 = vld [vmem:[#allocation3 + $0x320] sm:$0xff]
        %v847 = vld [vmem:[#allocation3 + $0x328] sm:$0xff]
        %v848 = vld [vmem:[#allocation3 + $0x330] sm:$0xff]
        %v849 = vld [vmem:[#allocation3 + $0x338] sm:$0xff]
        %v850 = vld [vmem:[#allocation3 + $0x340] sm:$0xff]
        %v851 = vld [vmem:[#allocation3 + $0x348] sm:$0xff]
        %v852 = vld [vmem:[#allocation3 + $0x350] sm:$0xff]
        %v853 = vld [vmem:[#allocation3 + $0x358] sm:$0xff]
        %v854 = vld [vmem:[#allocation3 + $0x360] sm:$0xff]
        %v855 = vld [vmem:[#allocation3 + $0x368] sm:$0xff]
        %v856 = vld [vmem:[#allocation3 + $0x370] sm:$0xff]
        %v857 = vld [vmem:[#allocation3 + $0x378] sm:$0xff]
        %v858 = vld [vmem:[#allocation3 + $0x380] sm:$0xff]
        %v859 = vld [vmem:[#allocation3 + $0x388] sm:$0xff]
        %v860 = vld [vmem:[#allocation3 + $0x390] sm:$0xff]
        %v861 = vld [vmem:[#allocation3 + $0x398] sm:$0xff]
        %v862 = vld [vmem:[#allocation3 + $0x3a0] sm:$0xff]
        %v863 = vld [vmem:[#allocation3 + $0x3a8] sm:$0xff]
        %v864 = vld [vmem:[#allocation3 + $0x3b0] sm:$0xff]
        %v865 = vld [vmem:[#allocation3 + $0x3b8] sm:$0xff]
        %v866 = vld [vmem:[#allocation3 + $0x3c0] sm:$0xff]
        %v867 = vld [vmem:[#allocation3 + $0x3c8] sm:$0xff]
        %v868 = vld [vmem:[#allocation3 + $0x3d0] sm:$0xff]
        %v869 = vld [vmem:[#allocation3 + $0x3d8] sm:$0xff]
        %v870 = vld [vmem:[#allocation3 + $0x3e0] sm:$0xff]
        %v871 = vld [vmem:[#allocation3 + $0x3e8] sm:$0xff]
        %v872 = vld [vmem:[#allocation3 + $0x3f0] sm:$0xff]
        %v873 = vld [vmem:[#allocation3 + $0x3f8] sm:$0xff]
        %v874 = vld [vmem:[#allocation3 + $0x400] sm:$0xff]
        %v875 = vld [vmem:[#allocation3 + $0x408] sm:$0xff]
        %v876 = vld [vmem:[#allocation3 + $0x410] sm:$0xff]
        %v877 = vld [vmem:[#allocation3 + $0x418] sm:$0xff]
        %v878 = vld [vmem:[#allocation3 + $0x420] sm:$0xff]
        %v879 = vld [vmem:[#allocation3 + $0x428] sm:$0xff]
        %v880 = vld [vmem:[#allocation3 + $0x430] sm:$0xff]
        %v881 = vld [vmem:[#allocation3 + $0x438] sm:$0xff]
        %v882 = vld [vmem:[#allocation3 + $0x440] sm:$0xff]
        %v883 = vld [vmem:[#allocation3 + $0x448] sm:$0xff]
        %v884 = vld [vmem:[#allocation3 + $0x450] sm:$0xff]
        %v885 = vld [vmem:[#allocation3 + $0x458] sm:$0xff]
        %v886 = vld [vmem:[#allocation3 + $0x460] sm:$0xff]
        %v887 = vld [vmem:[#allocation3 + $0x468] sm:$0xff]
        %v888 = vld [vmem:[#allocation3 + $0x470] sm:$0xff]
        %v889 = vld [vmem:[#allocation3 + $0x478] sm:$0xff]
        %v890 = vld [vmem:[#allocation3 + $0x480] sm:$0xff]
        %v891 = vld [vmem:[#allocation3 + $0x488] sm:$0xff]
        %v892 = vld [vmem:[#allocation3 + $0x490] sm:$0xff]
        %v893 = vld [vmem:[#allocation3 + $0x498] sm:$0xff]
        %v894 = vld [vmem:[#allocation3 + $0x4a0] sm:$0xff]
        %v895 = vld [vmem:[#allocation3 + $0x4a8] sm:$0xff]
        %v896 = vld [vmem:[#allocation3 + $0x4b0] sm:$0xff]
        %v897 = vld [vmem:[#allocation3 + $0x4b8] sm:$0xff]
        %v898 = vld [vmem:[#allocation3 + $0x4c0] sm:$0xff]
        %v899 = vld [vmem:[#allocation3 + $0x4c8] sm:$0xff]
        %v900 = vld [vmem:[#allocation3 + $0x4d0] sm:$0xff]
        %v901 = vld [vmem:[#allocation3 + $0x4d8] sm:$0xff]
        %v902 = vld [vmem:[#allocation3 + $0x4e0] sm:$0xff]
        %v903 = vld [vmem:[#allocation3 + $0x4e8] sm:$0xff]
        %v904 = vld [vmem:[#allocation3 + $0x4f0] sm:$0xff]
        %v905 = vld [vmem:[#allocation3 + $0x4f8] sm:$0xff]
        %v906 = vld [vmem:[#allocation3 + $0x500] sm:$0xff]
        %v907 = vld [vmem:[#allocation3 + $0x508] sm:$0xff]
        %v908 = vld [vmem:[#allocation3 + $0x510] sm:$0xff]
        %v909 = vld [vmem:[#allocation3 + $0x518] sm:$0xff]
        %v910 = vld [vmem:[#allocation3 + $0x520] sm:$0xff]
        %v911 = vld [vmem:[#allocation3 + $0x528] sm:$0xff]
        %v912 = vld [vmem:[#allocation3 + $0x530] sm:$0xff]
        %v913 = vld [vmem:[#allocation3 + $0x538] sm:$0xff]
        %v914 = vld [vmem:[#allocation3 + $0x540] sm:$0xff]
        %v915 = vld [vmem:[#allocation3 + $0x548] sm:$0xff]
        %v916 = vld [vmem:[#allocation3 + $0x550] sm:$0xff]
        %v917 = vld [vmem:[#allocation3 + $0x558] sm:$0xff]
        %v918 = vld [vmem:[#allocation3 + $0x560] sm:$0xff]
        %v919 = vld [vmem:[#allocation3 + $0x568] sm:$0xff]
        %v920 = vld [vmem:[#allocation3 + $0x570] sm:$0xff]
        %v921 = vld [vmem:[#allocation3 + $0x578] sm:$0xff]
        %v922 = vld [vmem:[#allocation3 + $0x580] sm:$0xff]
        %v923 = vld [vmem:[#allocation3 + $0x588] sm:$0xff]
        %v924 = vld [vmem:[#allocation3 + $0x590] sm:$0xff]
        %v925 = vld [vmem:[#allocation3 + $0x598] sm:$0xff]
        %v926 = vld [vmem:[#allocation3 + $0x5a0] sm:$0xff]
        %v927 = vld [vmem:[#allocation3 + $0x5a8] sm:$0xff]
        %v928 = vld [vmem:[#allocation3 + $0x5b0] sm:$0xff]
        %v929 = vld [vmem:[#allocation3 + $0x5b8] sm:$0xff]
        %v930 = vld [vmem:[#allocation3 + $0x5c0] sm:$0xff]
        %v931 = vld [vmem:[#allocation3 + $0x5c8] sm:$0xff]
        %v932 = vld [vmem:[#allocation3 + $0x5d0] sm:$0xff]
        %v933 = vld [vmem:[#allocation3 + $0x5d8] sm:$0xff]
        %v934 = vld [vmem:[#allocation3 + $0x5e0] sm:$0xff]
        %v935 = vld [vmem:[#allocation3 + $0x5e8] sm:$0xff]
        %v936 = vld [vmem:[#allocation3 + $0x5f0] sm:$0xff]
        %v937 = vld [vmem:[#allocation3 + $0x5f8] sm:$0xff]
        %v938 = vld [vmem:[#allocation3 + $0x600] sm:$0xff]
        %v939 = vld [vmem:[#allocation3 + $0x608] sm:$0xff]
        %v940 = vld [vmem:[#allocation3 + $0x610] sm:$0xff]
        %v941 = vld [vmem:[#allocation3 + $0x618] sm:$0xff]
        %v942 = vld [vmem:[#allocation3 + $0x620] sm:$0xff]
        %v943 = vld [vmem:[#allocation3 + $0x628] sm:$0xff]
        %v944 = vld [vmem:[#allocation3 + $0x630] sm:$0xff]
        %v945 = vld [vmem:[#allocation3 + $0x638] sm:$0xff]
        %v946 = vld [vmem:[#allocation3 + $0x640] sm:$0xff]
        %v947 = vld [vmem:[#allocation3 + $0x648] sm:$0xff]
        %v948 = vld [vmem:[#allocation3 + $0x650] sm:$0xff]
        %v949 = vld [vmem:[#allocation3 + $0x658] sm:$0xff]
        %v950 = vld [vmem:[#allocation3 + $0x660] sm:$0xff]
        %v951 = vld [vmem:[#allocation3 + $0x668] sm:$0xff]
        %v952 = vld [vmem:[#allocation3 + $0x670] sm:$0xff]
        %v953 = vld [vmem:[#allocation3 + $0x678] sm:$0xff]
        %v954 = vld [vmem:[#allocation3 + $0x680] sm:$0xff]
        %v955 = vld [vmem:[#allocation3 + $0x688] sm:$0xff]
        %v956 = vld [vmem:[#allocation3 + $0x690] sm:$0xff]
        %v957 = vld [vmem:[#allocation3 + $0x698] sm:$0xff]
        %v958 = vld [vmem:[#allocation3 + $0x6a0] sm:$0xff]
        %v959 = vld [vmem:[#allocation3 + $0x6a8] sm:$0xff]
        %v960 = vld [vmem:[#allocation3 + $0x6b0] sm:$0xff]
        %v961 = vld [vmem:[#allocation3 + $0x6b8] sm:$0xff]
        %v962 = vld [vmem:[#allocation3 + $0x6c0] sm:$0xff]
        %v963 = vld [vmem:[#allocation3 + $0x6c8] sm:$0xff]
        %v964 = vld [vmem:[#allocation3 + $0x6d0] sm:$0xff]
        %v965 = vld [vmem:[#allocation3 + $0x6d8] sm:$0xff]
        %v966 = vld [vmem:[#allocation3 + $0x6e0] sm:$0xff]
        %v967 = vld [vmem:[#allocation3 + $0x6e8] sm:$0xff]
        %v968 = vld [vmem:[#allocation3 + $0x6f0] sm:$0xff]
        %v969 = vld [vmem:[#allocation3 + $0x6f8] sm:$0xff]
        %v970 = vld [vmem:[%s5] sm:$0x3]
        %v972 = vlaneseq
        %v973 = vshrl.u32 %v972, 7
        %v974 = vsub.s32 0, %v973
        %v975 = vrot.slane %v970, %v974
        %v976 = vlaneseq
        %v977 = vshrl.u32 %v976, 7
        %v978 = vsub.s32 1, %v977
        %v979 = vrot.slane %v970, %v978
        %v1206 = vunpack.c.l.b16 %v746
        %v1207 = vunpack.c.h.b16 %v746
        %v1208 = vunpack.c.l.b16 %v747
        %v1209 = vunpack.c.h.b16 %v747
        %v1210 = vunpack.c.l.b16 %v748
        %v1211 = vunpack.c.h.b16 %v748
        %v1212 = vunpack.c.l.b16 %v749
        %v1213 = vunpack.c.h.b16 %v749
        %v1214 = vunpack.c.l.b16 %v750
        %v1215 = vunpack.c.h.b16 %v750
        %v1216 = vunpack.c.l.b16 %v751
        %v1217 = vunpack.c.h.b16 %v751
        %v1218 = vunpack.c.l.b16 %v752
        %v1219 = vunpack.c.h.b16 %v752
        %v1220 = vunpack.c.l.b16 %v753
        %v1221 = vunpack.c.h.b16 %v753
        %v1222 = vunpack.c.l.b16 %v754
        %v1223 = vunpack.c.h.b16 %v754
        %v1224 = vunpack.c.l.b16 %v755
        %v1225 = vunpack.c.h.b16 %v755
        %v1226 = vunpack.c.l.b16 %v756
        %v1227 = vunpack.c.h.b16 %v756
        %v1228 = vunpack.c.l.b16 %v757
        %v1229 = vunpack.c.h.b16 %v757
        %v1230 = vunpack.c.l.b16 %v758
        %v1231 = vunpack.c.h.b16 %v758
        %v1232 = vunpack.c.l.b16 %v759
        %v1233 = vunpack.c.h.b16 %v759
        %v1234 = vunpack.c.l.b16 %v760
        %v1235 = vunpack.c.h.b16 %v760
        %v1236 = vunpack.c.l.b16 %v761
        %v1237 = vunpack.c.h.b16 %v761
        %v1238 = vunpack.c.l.b16 %v762
        %v1239 = vunpack.c.h.b16 %v762
        %v1240 = vunpack.c.l.b16 %v763
        %v1241 = vunpack.c.h.b16 %v763
        %v1242 = vunpack.c.l.b16 %v764
        %v1243 = vunpack.c.h.b16 %v764
        %v1244 = vunpack.c.l.b16 %v765
        %v1245 = vunpack.c.h.b16 %v765
        %v1246 = vunpack.c.l.b16 %v766
        %v1247 = vunpack.c.h.b16 %v766
        %v1248 = vunpack.c.l.b16 %v767
        %v1249 = vunpack.c.h.b16 %v767
        %v1250 = vunpack.c.l.b16 %v768
        %v1251 = vunpack.c.h.b16 %v768
        %v1252 = vunpack.c.l.b16 %v769
        %v1253 = vunpack.c.h.b16 %v769
        %v1254 = vunpack.c.l.b16 %v770
        %v1255 = vunpack.c.h.b16 %v770
        %v1256 = vunpack.c.l.b16 %v771
        %v1257 = vunpack.c.h.b16 %v771
        %v1258 = vunpack.c.l.b16 %v772
        %v1259 = vunpack.c.h.b16 %v772
        %v1260 = vunpack.c.l.b16 %v773
        %v1261 = vunpack.c.h.b16 %v773
        %v1262 = vunpack.c.l.b16 %v774
        %v1263 = vunpack.c.h.b16 %v774
        %v1264 = vunpack.c.l.b16 %v775
        %v1265 = vunpack.c.h.b16 %v775
        %v1266 = vunpack.c.l.b16 %v776
        %v1267 = vunpack.c.h.b16 %v776
        %v1268 = vunpack.c.l.b16 %v777
        %v1269 = vunpack.c.h.b16 %v777
        %v1270 = vunpack.c.l.b16 %v778
        %v1271 = vunpack.c.h.b16 %v778
        %v1272 = vunpack.c.l.b16 %v779
        %v1273 = vunpack.c.h.b16 %v779
        %v1274 = vunpack.c.l.b16 %v780
        %v1275 = vunpack.c.h.b16 %v780
        %v1276 = vunpack.c.l.b16 %v781
        %v1277 = vunpack.c.h.b16 %v781
        %v1278 = vunpack.c.l.b16 %v782
        %v1279 = vunpack.c.h.b16 %v782
        %v1280 = vunpack.c.l.b16 %v783
        %v1281 = vunpack.c.h.b16 %v783
        %v1282 = vunpack.c.l.b16 %v784
        %v1283 = vunpack.c.h.b16 %v784
        %v1284 = vunpack.c.l.b16 %v785
        %v1285 = vunpack.c.h.b16 %v785
        %v1286 = vunpack.c.l.b16 %v786
        %v1287 = vunpack.c.h.b16 %v786
        %v1288 = vunpack.c.l.b16 %v787
        %v1289 = vunpack.c.h.b16 %v787
        %v1290 = vunpack.c.l.b16 %v788
        %v1291 = vunpack.c.h.b16 %v788
        %v1292 = vunpack.c.l.b16 %v789
        %v1293 = vunpack.c.h.b16 %v789
        %v1294 = vunpack.c.l.b16 %v790
        %v1295 = vunpack.c.h.b16 %v790
        %v1296 = vunpack.c.l.b16 %v791
        %v1297 = vunpack.c.h.b16 %v791
        %v1298 = vunpack.c.l.b16 %v792
        %v1299 = vunpack.c.h.b16 %v792
        %v1300 = vunpack.c.l.b16 %v793
        %v1301 = vunpack.c.h.b16 %v793
        %v1302 = vunpack.c.l.b16 %v794
        %v1303 = vunpack.c.h.b16 %v794
        %v1304 = vunpack.c.l.b16 %v795
        %v1305 = vunpack.c.h.b16 %v795
        %v1306 = vunpack.c.l.b16 %v796
        %v1307 = vunpack.c.h.b16 %v796
        %v1308 = vunpack.c.l.b16 %v797
        %v1309 = vunpack.c.h.b16 %v797
        %v1310 = vunpack.c.l.b16 %v798
        %v1311 = vunpack.c.h.b16 %v798
        %v1312 = vunpack.c.l.b16 %v799
        %v1313 = vunpack.c.h.b16 %v799
        %v1314 = vunpack.c.l.b16 %v800
        %v1315 = vunpack.c.h.b16 %v800
        %v1316 = vunpack.c.l.b16 %v801
        %v1317 = vunpack.c.h.b16 %v801
        %v1318 = vunpack.c.l.b16 %v802
        %v1319 = vunpack.c.h.b16 %v802
        %v1320 = vunpack.c.l.b16 %v803
        %v1321 = vunpack.c.h.b16 %v803
        %v1322 = vunpack.c.l.b16 %v804
        %v1323 = vunpack.c.h.b16 %v804
        %v1324 = vunpack.c.l.b16 %v805
        %v1325 = vunpack.c.h.b16 %v805
        %v1326 = vunpack.c.l.b16 %v806
        %v1327 = vunpack.c.h.b16 %v806
        %v1328 = vunpack.c.l.b16 %v807
        %v1329 = vunpack.c.h.b16 %v807
        %v1330 = vunpack.c.l.b16 %v808
        %v1331 = vunpack.c.h.b16 %v808
        %v1332 = vunpack.c.l.b16 %v809
        %v1333 = vunpack.c.h.b16 %v809
        %v1334 = vunpack.c.l.b16 %v810
        %v1335 = vunpack.c.h.b16 %v810
        %v1336 = vunpack.c.l.b16 %v811
        %v1337 = vunpack.c.h.b16 %v811
        %v1338 = vunpack.c.l.b16 %v812
        %v1339 = vunpack.c.h.b16 %v812
        %v1340 = vunpack.c.l.b16 %v813
        %v1341 = vunpack.c.h.b16 %v813
        %v1342 = vunpack.c.l.b16 %v814
        %v1343 = vunpack.c.h.b16 %v814
        %v1344 = vunpack.c.l.b16 %v815
        %v1345 = vunpack.c.h.b16 %v815
        %v1346 = vunpack.c.l.b16 %v816
        %v1347 = vunpack.c.h.b16 %v816
        %v1348 = vunpack.c.l.b16 %v817
        %v1349 = vunpack.c.h.b16 %v817
        %v1350 = vunpack.c.l.b16 %v818
        %v1351 = vunpack.c.h.b16 %v818
        %v1352 = vunpack.c.l.b16 %v819
        %v1353 = vunpack.c.h.b16 %v819
        %v1354 = vunpack.c.l.b16 %v820
        %v1355 = vunpack.c.h.b16 %v820
        %v1356 = vunpack.c.l.b16 %v821
        %v1357 = vunpack.c.h.b16 %v821
        %v1358 = vunpack.c.l.b16 %v822
        %v1359 = vunpack.c.h.b16 %v822
        %v1360 = vunpack.c.l.b16 %v823
        %v1361 = vunpack.c.h.b16 %v823
        %v1362 = vunpack.c.l.b16 %v824
        %v1363 = vunpack.c.h.b16 %v824
        %v1364 = vunpack.c.l.b16 %v825
        %v1365 = vunpack.c.h.b16 %v825
        %v1366 = vunpack.c.l.b16 %v826
        %v1367 = vunpack.c.h.b16 %v826
        %v1368 = vunpack.c.l.b16 %v827
        %v1369 = vunpack.c.h.b16 %v827
        %v1370 = vunpack.c.l.b16 %v828
        %v1371 = vunpack.c.h.b16 %v828
        %v1372 = vunpack.c.l.b16 %v829
        %v1373 = vunpack.c.h.b16 %v829
        %v1374 = vunpack.c.l.b16 %v830
        %v1375 = vunpack.c.h.b16 %v830
        %v1376 = vunpack.c.l.b16 %v831
        %v1377 = vunpack.c.h.b16 %v831
        %v1378 = vunpack.c.l.b16 %v832
        %v1379 = vunpack.c.h.b16 %v832
        %v1380 = vunpack.c.l.b16 %v833
        %v1381 = vunpack.c.h.b16 %v833
        %v1382 = vunpack.c.l.b16 %v834
        %v1383 = vunpack.c.h.b16 %v834
        %v1384 = vunpack.c.l.b16 %v835
        %v1385 = vunpack.c.h.b16 %v835
        %v1386 = vunpack.c.l.b16 %v836
        %v1387 = vunpack.c.h.b16 %v836
        %v1388 = vunpack.c.l.b16 %v837
        %v1389 = vunpack.c.h.b16 %v837
        %v1390 = vunpack.c.l.b16 %v838
        %v1391 = vunpack.c.h.b16 %v838
        %v1392 = vunpack.c.l.b16 %v839
        %v1393 = vunpack.c.h.b16 %v839
        %v1394 = vunpack.c.l.b16 %v840
        %v1395 = vunpack.c.h.b16 %v840
        %v1396 = vunpack.c.l.b16 %v841
        %v1397 = vunpack.c.h.b16 %v841
        %v1398 = vunpack.c.l.b16 %v842
        %v1399 = vunpack.c.h.b16 %v842
        %v1400 = vunpack.c.l.b16 %v843
        %v1401 = vunpack.c.h.b16 %v843
        %v1402 = vunpack.c.l.b16 %v844
        %v1403 = vunpack.c.h.b16 %v844
        %v1404 = vunpack.c.l.b16 %v845
        %v1405 = vunpack.c.h.b16 %v845
        %v1406 = vunpack.c.l.b16 %v846
        %v1407 = vunpack.c.h.b16 %v846
        %v1408 = vunpack.c.l.b16 %v847
        %v1409 = vunpack.c.h.b16 %v847
        %v1410 = vunpack.c.l.b16 %v848
        %v1411 = vunpack.c.h.b16 %v848
        %v1412 = vunpack.c.l.b16 %v849
        %v1413 = vunpack.c.h.b16 %v849
        %v1414 = vunpack.c.l.b16 %v850
        %v1415 = vunpack.c.h.b16 %v850
        %v1416 = vunpack.c.l.b16 %v851
        %v1417 = vunpack.c.h.b16 %v851
        %v1418 = vunpack.c.l.b16 %v852
        %v1419 = vunpack.c.h.b16 %v852
        %v1420 = vunpack.c.l.b16 %v853
        %v1421 = vunpack.c.h.b16 %v853
        %v1422 = vunpack.c.l.b16 %v854
        %v1423 = vunpack.c.h.b16 %v854
        %v1424 = vunpack.c.l.b16 %v855
        %v1425 = vunpack.c.h.b16 %v855
        %v1426 = vunpack.c.l.b16 %v856
        %v1427 = vunpack.c.h.b16 %v856
        %v1428 = vunpack.c.l.b16 %v857
        %v1429 = vunpack.c.h.b16 %v857
        %v1430 = vunpack.c.l.b16 %v858
        %v1431 = vunpack.c.h.b16 %v858
        %v1432 = vunpack.c.l.b16 %v859
        %v1433 = vunpack.c.h.b16 %v859
        %v1434 = vunpack.c.l.b16 %v860
        %v1435 = vunpack.c.h.b16 %v860
        %v1436 = vunpack.c.l.b16 %v861
        %v1437 = vunpack.c.h.b16 %v861
        %v1438 = vunpack.c.l.b16 %v862
        %v1439 = vunpack.c.h.b16 %v862
        %v1440 = vunpack.c.l.b16 %v863
        %v1441 = vunpack.c.h.b16 %v863
        %v1442 = vunpack.c.l.b16 %v864
        %v1443 = vunpack.c.h.b16 %v864
        %v1444 = vunpack.c.l.b16 %v865
        %v1445 = vunpack.c.h.b16 %v865
        %v1446 = vunpack.c.l.b16 %v866
        %v1447 = vunpack.c.h.b16 %v866
        %v1448 = vunpack.c.l.b16 %v867
        %v1449 = vunpack.c.h.b16 %v867
        %v1450 = vunpack.c.l.b16 %v868
        %v1451 = vunpack.c.h.b16 %v868
        %v1452 = vunpack.c.l.b16 %v869
        %v1453 = vunpack.c.h.b16 %v869
        %v1454 = vunpack.c.l.b16 %v870
        %v1455 = vunpack.c.h.b16 %v870
        %v1456 = vunpack.c.l.b16 %v871
        %v1457 = vunpack.c.h.b16 %v871
        %v1458 = vunpack.c.l.b16 %v872
        %v1459 = vunpack.c.h.b16 %v872
        %v1460 = vunpack.c.l.b16 %v873
        %v1461 = vunpack.c.h.b16 %v873
        %v1462 = vunpack.c.l.b16 %v874
        %v1463 = vunpack.c.h.b16 %v874
        %v1464 = vunpack.c.l.b16 %v875
        %v1465 = vunpack.c.h.b16 %v875
        %v1466 = vunpack.c.l.b16 %v876
        %v1467 = vunpack.c.h.b16 %v876
        %v1468 = vunpack.c.l.b16 %v877
        %v1469 = vunpack.c.h.b16 %v877
        %v1470 = vunpack.c.l.b16 %v878
        %v1471 = vunpack.c.h.b16 %v878
        %v1472 = vunpack.c.l.b16 %v879
        %v1473 = vunpack.c.h.b16 %v879
        %v1474 = vunpack.c.l.b16 %v880
        %v1475 = vunpack.c.h.b16 %v880
        %v1476 = vunpack.c.l.b16 %v881
        %v1477 = vunpack.c.h.b16 %v881
        %v1478 = vunpack.c.l.b16 %v882
        %v1479 = vunpack.c.h.b16 %v882
        %v1480 = vunpack.c.l.b16 %v883
        %v1481 = vunpack.c.h.b16 %v883
        %v1482 = vunpack.c.l.b16 %v884
        %v1483 = vunpack.c.h.b16 %v884
        %v1484 = vunpack.c.l.b16 %v885
        %v1485 = vunpack.c.h.b16 %v885
        %v1486 = vunpack.c.l.b16 %v886
        %v1487 = vunpack.c.h.b16 %v886
        %v1488 = vunpack.c.l.b16 %v887
        %v1489 = vunpack.c.h.b16 %v887
        %v1490 = vunpack.c.l.b16 %v888
        %v1491 = vunpack.c.h.b16 %v888
        %v1492 = vunpack.c.l.b16 %v889
        %v1493 = vunpack.c.h.b16 %v889
        %v1494 = vunpack.c.l.b16 %v890
        %v1495 = vunpack.c.h.b16 %v890
        %v1496 = vunpack.c.l.b16 %v891
        %v1497 = vunpack.c.h.b16 %v891
        %v1498 = vunpack.c.l.b16 %v892
        %v1499 = vunpack.c.h.b16 %v892
        %v1500 = vunpack.c.l.b16 %v893
        %v1501 = vunpack.c.h.b16 %v893
        %v1502 = vunpack.c.l.b16 %v894
        %v1503 = vunpack.c.h.b16 %v894
        %v1504 = vunpack.c.l.b16 %v895
        %v1505 = vunpack.c.h.b16 %v895
        %v1506 = vunpack.c.l.b16 %v896
        %v1507 = vunpack.c.h.b16 %v896
        %v1508 = vunpack.c.l.b16 %v897
        %v1509 = vunpack.c.h.b16 %v897
        %v1510 = vunpack.c.l.b16 %v898
        %v1511 = vunpack.c.h.b16 %v898
        %v1512 = vunpack.c.l.b16 %v899
        %v1513 = vunpack.c.h.b16 %v899
        %v1514 = vunpack.c.l.b16 %v900
        %v1515 = vunpack.c.h.b16 %v900
        %v1516 = vunpack.c.l.b16 %v901
        %v1517 = vunpack.c.h.b16 %v901
        %v1518 = vunpack.c.l.b16 %v902
        %v1519 = vunpack.c.h.b16 %v902
        %v1520 = vunpack.c.l.b16 %v903
        %v1521 = vunpack.c.h.b16 %v903
        %v1522 = vunpack.c.l.b16 %v904
        %v1523 = vunpack.c.h.b16 %v904
        %v1524 = vunpack.c.l.b16 %v905
        %v1525 = vunpack.c.h.b16 %v905
        %v1526 = vunpack.c.l.b16 %v906
        %v1527 = vunpack.c.h.b16 %v906
        %v1528 = vunpack.c.l.b16 %v907
        %v1529 = vunpack.c.h.b16 %v907
        %v1530 = vunpack.c.l.b16 %v908
        %v1531 = vunpack.c.h.b16 %v908
        %v1532 = vunpack.c.l.b16 %v909
        %v1533 = vunpack.c.h.b16 %v909
        %v1534 = vunpack.c.l.b16 %v910
        %v1535 = vunpack.c.h.b16 %v910
        %v1536 = vunpack.c.l.b16 %v911
        %v1537 = vunpack.c.h.b16 %v911
        %v1538 = vunpack.c.l.b16 %v912
        %v1539 = vunpack.c.h.b16 %v912
        %v1540 = vunpack.c.l.b16 %v913
        %v1541 = vunpack.c.h.b16 %v913
        %v1542 = vunpack.c.l.b16 %v914
        %v1543 = vunpack.c.h.b16 %v914
        %v1544 = vunpack.c.l.b16 %v915
        %v1545 = vunpack.c.h.b16 %v915
        %v1546 = vunpack.c.l.b16 %v916
        %v1547 = vunpack.c.h.b16 %v916
        %v1548 = vunpack.c.l.b16 %v917
        %v1549 = vunpack.c.h.b16 %v917
        %v1550 = vunpack.c.l.b16 %v918
        %v1551 = vunpack.c.h.b16 %v918
        %v1552 = vunpack.c.l.b16 %v919
        %v1553 = vunpack.c.h.b16 %v919
        %v1554 = vunpack.c.l.b16 %v920
        %v1555 = vunpack.c.h.b16 %v920
        %v1556 = vunpack.c.l.b16 %v921
        %v1557 = vunpack.c.h.b16 %v921
        %v1558 = vunpack.c.l.b16 %v922
        %v1559 = vunpack.c.h.b16 %v922
        %v1560 = vunpack.c.l.b16 %v923
        %v1561 = vunpack.c.h.b16 %v923
        %v1562 = vunpack.c.l.b16 %v924
        %v1563 = vunpack.c.h.b16 %v924
        %v1564 = vunpack.c.l.b16 %v925
        %v1565 = vunpack.c.h.b16 %v925
        %v1566 = vunpack.c.l.b16 %v926
        %v1567 = vunpack.c.h.b16 %v926
        %v1568 = vunpack.c.l.b16 %v927
        %v1569 = vunpack.c.h.b16 %v927
        %v1570 = vunpack.c.l.b16 %v928
        %v1571 = vunpack.c.h.b16 %v928
        %v1572 = vunpack.c.l.b16 %v929
        %v1573 = vunpack.c.h.b16 %v929
        %v1574 = vunpack.c.l.b16 %v930
        %v1575 = vunpack.c.h.b16 %v930
        %v1576 = vunpack.c.l.b16 %v931
        %v1577 = vunpack.c.h.b16 %v931
        %v1578 = vunpack.c.l.b16 %v932
        %v1579 = vunpack.c.h.b16 %v932
        %v1580 = vunpack.c.l.b16 %v933
        %v1581 = vunpack.c.h.b16 %v933
        %v1582 = vunpack.c.l.b16 %v934
        %v1583 = vunpack.c.h.b16 %v934
        %v1584 = vunpack.c.l.b16 %v935
        %v1585 = vunpack.c.h.b16 %v935
        %v1586 = vunpack.c.l.b16 %v936
        %v1587 = vunpack.c.h.b16 %v936
        %v1588 = vunpack.c.l.b16 %v937
        %v1589 = vunpack.c.h.b16 %v937
        %v1590 = vunpack.c.l.b16 %v938
        %v1591 = vunpack.c.h.b16 %v938
        %v1592 = vunpack.c.l.b16 %v939
        %v1593 = vunpack.c.h.b16 %v939
        %v1594 = vunpack.c.l.b16 %v940
        %v1595 = vunpack.c.h.b16 %v940
        %v1596 = vunpack.c.l.b16 %v941
        %v1597 = vunpack.c.h.b16 %v941
        %v1598 = vunpack.c.l.b16 %v942
        %v1599 = vunpack.c.h.b16 %v942
        %v1600 = vunpack.c.l.b16 %v943
        %v1601 = vunpack.c.h.b16 %v943
        %v1602 = vunpack.c.l.b16 %v944
        %v1603 = vunpack.c.h.b16 %v944
        %v1604 = vunpack.c.l.b16 %v945
        %v1605 = vunpack.c.h.b16 %v945
        %v1606 = vunpack.c.l.b16 %v946
        %v1607 = vunpack.c.h.b16 %v946
        %v1608 = vunpack.c.l.b16 %v947
        %v1609 = vunpack.c.h.b16 %v947
        %v1610 = vunpack.c.l.b16 %v948
        %v1611 = vunpack.c.h.b16 %v948
        %v1612 = vunpack.c.l.b16 %v949
        %v1613 = vunpack.c.h.b16 %v949
        %v1614 = vunpack.c.l.b16 %v950
        %v1615 = vunpack.c.h.b16 %v950
        %v1616 = vunpack.c.l.b16 %v951
        %v1617 = vunpack.c.h.b16 %v951
        %v1618 = vunpack.c.l.b16 %v952
        %v1619 = vunpack.c.h.b16 %v952
        %v1620 = vunpack.c.l.b16 %v953
        %v1621 = vunpack.c.h.b16 %v953
        %v1622 = vunpack.c.l.b16 %v954
        %v1623 = vunpack.c.h.b16 %v954
        %v1624 = vunpack.c.l.b16 %v955
        %v1625 = vunpack.c.h.b16 %v955
        %v1626 = vunpack.c.l.b16 %v956
        %v1627 = vunpack.c.h.b16 %v956
        %v1628 = vunpack.c.l.b16 %v957
        %v1629 = vunpack.c.h.b16 %v957
        %v1630 = vunpack.c.l.b16 %v958
        %v1631 = vunpack.c.h.b16 %v958
        %v1632 = vunpack.c.l.b16 %v959
        %v1633 = vunpack.c.h.b16 %v959
        %v1634 = vunpack.c.l.b16 %v960
        %v1635 = vunpack.c.h.b16 %v960
        %v1636 = vunpack.c.l.b16 %v961
        %v1637 = vunpack.c.h.b16 %v961
        %v1638 = vunpack.c.l.b16 %v962
        %v1639 = vunpack.c.h.b16 %v962
        %v1640 = vunpack.c.l.b16 %v963
        %v1641 = vunpack.c.h.b16 %v963
        %v1642 = vunpack.c.l.b16 %v964
        %v1643 = vunpack.c.h.b16 %v964
        %v1644 = vunpack.c.l.b16 %v965
        %v1645 = vunpack.c.h.b16 %v965
        %v1646 = vunpack.c.l.b16 %v966
        %v1647 = vunpack.c.h.b16 %v966
        %v1648 = vunpack.c.l.b16 %v967
        %v1649 = vunpack.c.h.b16 %v967
        %v1650 = vunpack.c.l.b16 %v968
        %v1651 = vunpack.c.h.b16 %v968
        %v1652 = vunpack.c.l.b16 %v969
        %v1653 = vunpack.c.h.b16 %v969
        %v1654 = vpack.c.b16 %v1208, %v1206
        %v1655 = vpack.c.b16 %v1209, %v1207
        %v1656 = vpack.c.b16 %v1212, %v1210
        %v1657 = vpack.c.b16 %v1213, %v1211
        %v1658 = vpack.c.b16 %v1216, %v1214
        %v1659 = vpack.c.b16 %v1217, %v1215
        %v1660 = vpack.c.b16 %v1220, %v1218
        %v1661 = vpack.c.b16 %v1221, %v1219
        %v1662 = vpack.c.b16 %v1224, %v1222
        %v1663 = vpack.c.b16 %v1225, %v1223
        %v1664 = vpack.c.b16 %v1228, %v1226
        %v1665 = vpack.c.b16 %v1229, %v1227
        %v1666 = vpack.c.b16 %v1232, %v1230
        %v1667 = vpack.c.b16 %v1233, %v1231
        %v1668 = vpack.c.b16 %v1236, %v1234
        %v1669 = vpack.c.b16 %v1237, %v1235
        %v1670 = vpack.c.b16 %v1240, %v1238
        %v1671 = vpack.c.b16 %v1241, %v1239
        %v1672 = vpack.c.b16 %v1244, %v1242
        %v1673 = vpack.c.b16 %v1245, %v1243
        %v1674 = vpack.c.b16 %v1248, %v1246
        %v1675 = vpack.c.b16 %v1249, %v1247
        %v1676 = vpack.c.b16 %v1252, %v1250
        %v1677 = vpack.c.b16 %v1253, %v1251
        %v1678 = vpack.c.b16 %v1256, %v1254
        %v1679 = vpack.c.b16 %v1257, %v1255
        %v1680 = vpack.c.b16 %v1260, %v1258
        %v1681 = vpack.c.b16 %v1261, %v1259
        %v1682 = vpack.c.b16 %v1264, %v1262
        %v1683 = vpack.c.b16 %v1265, %v1263
        %v1684 = vpack.c.b16 %v1268, %v1266
        %v1685 = vpack.c.b16 %v1269, %v1267
        %v1686 = vpack.c.b16 %v1272, %v1270
        %v1687 = vpack.c.b16 %v1273, %v1271
        %v1688 = vpack.c.b16 %v1276, %v1274
        %v1689 = vpack.c.b16 %v1277, %v1275
        %v1690 = vpack.c.b16 %v1280, %v1278
        %v1691 = vpack.c.b16 %v1281, %v1279
        %v1692 = vpack.c.b16 %v1284, %v1282
        %v1693 = vpack.c.b16 %v1285, %v1283
        %v1694 = vpack.c.b16 %v1288, %v1286
        %v1695 = vpack.c.b16 %v1289, %v1287
        %v1696 = vpack.c.b16 %v1292, %v1290
        %v1697 = vpack.c.b16 %v1293, %v1291
        %v1698 = vpack.c.b16 %v1296, %v1294
        %v1699 = vpack.c.b16 %v1297, %v1295
        %v1700 = vpack.c.b16 %v1300, %v1298
        %v1701 = vpack.c.b16 %v1301, %v1299
        %v1702 = vpack.c.b16 %v1304, %v1302
        %v1703 = vpack.c.b16 %v1305, %v1303
        %v1704 = vpack.c.b16 %v1308, %v1306
        %v1705 = vpack.c.b16 %v1309, %v1307
        %v1706 = vpack.c.b16 %v1312, %v1310
        %v1707 = vpack.c.b16 %v1313, %v1311
        %v1708 = vpack.c.b16 %v1316, %v1314
        %v1709 = vpack.c.b16 %v1317, %v1315
        %v1710 = vpack.c.b16 %v1320, %v1318
        %v1711 = vpack.c.b16 %v1321, %v1319
        %v1712 = vpack.c.b16 %v1324, %v1322
        %v1713 = vpack.c.b16 %v1325, %v1323
        %v1714 = vpack.c.b16 %v1328, %v1326
        %v1715 = vpack.c.b16 %v1329, %v1327
        %v1716 = vpack.c.b16 %v1332, %v1330
        %v1717 = vpack.c.b16 %v1333, %v1331
        %v1718 = vpack.c.b16 %v1336, %v1334
        %v1719 = vpack.c.b16 %v1337, %v1335
        %v1720 = vpack.c.b16 %v1340, %v1338
        %v1721 = vpack.c.b16 %v1341, %v1339
        %v1722 = vpack.c.b16 %v1344, %v1342
        %v1723 = vpack.c.b16 %v1345, %v1343
        %v1724 = vpack.c.b16 %v1348, %v1346
        %v1725 = vpack.c.b16 %v1349, %v1347
        %v1726 = vpack.c.b16 %v1352, %v1350
        %v1727 = vpack.c.b16 %v1353, %v1351
        %v1728 = vpack.c.b16 %v1356, %v1354
        %v1729 = vpack.c.b16 %v1357, %v1355
        %v1730 = vpack.c.b16 %v1360, %v1358
        %v1731 = vpack.c.b16 %v1361, %v1359
        %v1732 = vpack.c.b16 %v1364, %v1362
        %v1733 = vpack.c.b16 %v1365, %v1363
        %v1734 = vpack.c.b16 %v1368, %v1366
        %v1735 = vpack.c.b16 %v1369, %v1367
        %v1736 = vpack.c.b16 %v1372, %v1370
        %v1737 = vpack.c.b16 %v1373, %v1371
        %v1738 = vpack.c.b16 %v1376, %v1374
        %v1739 = vpack.c.b16 %v1377, %v1375
        %v1740 = vpack.c.b16 %v1380, %v1378
        %v1741 = vpack.c.b16 %v1381, %v1379
        %v1742 = vpack.c.b16 %v1384, %v1382
        %v1743 = vpack.c.b16 %v1385, %v1383
        %v1744 = vpack.c.b16 %v1388, %v1386
        %v1745 = vpack.c.b16 %v1389, %v1387
        %v1746 = vpack.c.b16 %v1392, %v1390
        %v1747 = vpack.c.b16 %v1393, %v1391
        %v1748 = vpack.c.b16 %v1396, %v1394
        %v1749 = vpack.c.b16 %v1397, %v1395
        %v1750 = vpack.c.b16 %v1400, %v1398
        %v1751 = vpack.c.b16 %v1401, %v1399
        %v1752 = vpack.c.b16 %v1404, %v1402
        %v1753 = vpack.c.b16 %v1405, %v1403
        %v1754 = vpack.c.b16 %v1408, %v1406
        %v1755 = vpack.c.b16 %v1409, %v1407
        %v1756 = vpack.c.b16 %v1412, %v1410
        %v1757 = vpack.c.b16 %v1413, %v1411
        %v1758 = vpack.c.b16 %v1416, %v1414
        %v1759 = vpack.c.b16 %v1417, %v1415
        %v1760 = vpack.c.b16 %v1420, %v1418
        %v1761 = vpack.c.b16 %v1421, %v1419
        %v1762 = vpack.c.b16 %v1424, %v1422
        %v1763 = vpack.c.b16 %v1425, %v1423
        %v1764 = vpack.c.b16 %v1428, %v1426
        %v1765 = vpack.c.b16 %v1429, %v1427
        %v1766 = vpack.c.b16 %v1432, %v1430
        %v1767 = vpack.c.b16 %v1433, %v1431
        %v1768 = vpack.c.b16 %v1436, %v1434
        %v1769 = vpack.c.b16 %v1437, %v1435
        %v1770 = vpack.c.b16 %v1440, %v1438
        %v1771 = vpack.c.b16 %v1441, %v1439
        %v1772 = vpack.c.b16 %v1444, %v1442
        %v1773 = vpack.c.b16 %v1445, %v1443
        %v1774 = vpack.c.b16 %v1448, %v1446
        %v1775 = vpack.c.b16 %v1449, %v1447
        %v1776 = vpack.c.b16 %v1452, %v1450
        %v1777 = vpack.c.b16 %v1453, %v1451
        %v1778 = vpack.c.b16 %v1456, %v1454
        %v1779 = vpack.c.b16 %v1457, %v1455
        %v1780 = vpack.c.b16 %v1460, %v1458
        %v1781 = vpack.c.b16 %v1461, %v1459
        %v1782 = vpack.c.b16 %v1464, %v1462
        %v1783 = vpack.c.b16 %v1465, %v1463
        %v1784 = vpack.c.b16 %v1468, %v1466
        %v1785 = vpack.c.b16 %v1469, %v1467
        %v1786 = vpack.c.b16 %v1472, %v1470
        %v1787 = vpack.c.b16 %v1473, %v1471
        %v1788 = vpack.c.b16 %v1476, %v1474
        %v1789 = vpack.c.b16 %v1477, %v1475
        %v1790 = vpack.c.b16 %v1480, %v1478
        %v1791 = vpack.c.b16 %v1481, %v1479
        %v1792 = vpack.c.b16 %v1484, %v1482
        %v1793 = vpack.c.b16 %v1485, %v1483
        %v1794 = vpack.c.b16 %v1488, %v1486
        %v1795 = vpack.c.b16 %v1489, %v1487
        %v1796 = vpack.c.b16 %v1492, %v1490
        %v1797 = vpack.c.b16 %v1493, %v1491
        %v1798 = vpack.c.b16 %v1496, %v1494
        %v1799 = vpack.c.b16 %v1497, %v1495
        %v1800 = vpack.c.b16 %v1500, %v1498
        %v1801 = vpack.c.b16 %v1501, %v1499
        %v1802 = vpack.c.b16 %v1504, %v1502
        %v1803 = vpack.c.b16 %v1505, %v1503
        %v1804 = vpack.c.b16 %v1508, %v1506
        %v1805 = vpack.c.b16 %v1509, %v1507
        %v1806 = vpack.c.b16 %v1512, %v1510
        %v1807 = vpack.c.b16 %v1513, %v1511
        %v1808 = vpack.c.b16 %v1516, %v1514
        %v1809 = vpack.c.b16 %v1517, %v1515
        %v1810 = vpack.c.b16 %v1520, %v1518
        %v1811 = vpack.c.b16 %v1521, %v1519
        %v1812 = vpack.c.b16 %v1524, %v1522
        %v1813 = vpack.c.b16 %v1525, %v1523
        %v1814 = vpack.c.b16 %v1528, %v1526
        %v1815 = vpack.c.b16 %v1529, %v1527
        %v1816 = vpack.c.b16 %v1532, %v1530
        %v1817 = vpack.c.b16 %v1533, %v1531
        %v1818 = vpack.c.b16 %v1536, %v1534
        %v1819 = vpack.c.b16 %v1537, %v1535
        %v1820 = vpack.c.b16 %v1540, %v1538
        %v1821 = vpack.c.b16 %v1541, %v1539
        %v1822 = vpack.c.b16 %v1544, %v1542
        %v1823 = vpack.c.b16 %v1545, %v1543
        %v1824 = vpack.c.b16 %v1548, %v1546
        %v1825 = vpack.c.b16 %v1549, %v1547
        %v1826 = vpack.c.b16 %v1552, %v1550
        %v1827 = vpack.c.b16 %v1553, %v1551
        %v1828 = vpack.c.b16 %v1556, %v1554
        %v1829 = vpack.c.b16 %v1557, %v1555
        %v1830 = vpack.c.b16 %v1560, %v1558
        %v1831 = vpack.c.b16 %v1561, %v1559
        %v1832 = vpack.c.b16 %v1564, %v1562
        %v1833 = vpack.c.b16 %v1565, %v1563
        %v1834 = vpack.c.b16 %v1568, %v1566
        %v1835 = vpack.c.b16 %v1569, %v1567
        %v1836 = vpack.c.b16 %v1572, %v1570
        %v1837 = vpack.c.b16 %v1573, %v1571
        %v1838 = vpack.c.b16 %v1576, %v1574
        %v1839 = vpack.c.b16 %v1577, %v1575
        %v1840 = vpack.c.b16 %v1580, %v1578
        %v1841 = vpack.c.b16 %v1581, %v1579
        %v1842 = vpack.c.b16 %v1584, %v1582
        %v1843 = vpack.c.b16 %v1585, %v1583
        %v1844 = vpack.c.b16 %v1588, %v1586
        %v1845 = vpack.c.b16 %v1589, %v1587
        %v1846 = vpack.c.b16 %v1592, %v1590
        %v1847 = vpack.c.b16 %v1593, %v1591
        %v1848 = vpack.c.b16 %v1596, %v1594
        %v1849 = vpack.c.b16 %v1597, %v1595
        %v1850 = vpack.c.b16 %v1600, %v1598
        %v1851 = vpack.c.b16 %v1601, %v1599
        %v1852 = vpack.c.b16 %v1604, %v1602
        %v1853 = vpack.c.b16 %v1605, %v1603
        %v1854 = vpack.c.b16 %v1608, %v1606
        %v1855 = vpack.c.b16 %v1609, %v1607
        %v1856 = vpack.c.b16 %v1612, %v1610
        %v1857 = vpack.c.b16 %v1613, %v1611
        %v1858 = vpack.c.b16 %v1616, %v1614
        %v1859 = vpack.c.b16 %v1617, %v1615
        %v1860 = vpack.c.b16 %v1620, %v1618
        %v1861 = vpack.c.b16 %v1621, %v1619
        %v1862 = vpack.c.b16 %v1624, %v1622
        %v1863 = vpack.c.b16 %v1625, %v1623
        %v1864 = vpack.c.b16 %v1628, %v1626
        %v1865 = vpack.c.b16 %v1629, %v1627
        %v1866 = vpack.c.b16 %v1632, %v1630
        %v1867 = vpack.c.b16 %v1633, %v1631
        %v1868 = vpack.c.b16 %v1636, %v1634
        %v1869 = vpack.c.b16 %v1637, %v1635
        %v1870 = vpack.c.b16 %v1640, %v1638
        %v1871 = vpack.c.b16 %v1641, %v1639
        %v1872 = vpack.c.b16 %v1644, %v1642
        %v1873 = vpack.c.b16 %v1645, %v1643
        %v1874 = vpack.c.b16 %v1648, %v1646
        %v1875 = vpack.c.b16 %v1649, %v1647
        %v1876 = vpack.c.b16 %v1652, %v1650
        %v1877 = vpack.c.b16 %v1653, %v1651
        %2102 = vmatprep.subr.bf16.mxu0 %v1655
        %2103 = vmatpush1.bf16.msra.mxu0 %v1654
        %2104 = vmatprep.subr.bf16.mxu0 %v1657
        %2105 = vmatpush1.bf16.msra.mxu0 %v1656
        %2106 = vmatprep.subr.bf16.mxu0 %v1659
        %2107 = vmatpush1.bf16.msra.mxu0 %v1658
        %2108 = vmatprep.subr.bf16.mxu0 %v1661
        %2109 = vmatpush1.bf16.msra.mxu0 %v1660
        %2110 = vmatprep.subr.bf16.mxu0 %v1663
        %2111 = vmatpush1.bf16.msra.mxu0 %v1662
        %2112 = vmatprep.subr.bf16.mxu0 %v1665
        %2113 = vmatpush1.bf16.msra.mxu0 %v1664
        %2114 = vmatprep.subr.bf16.mxu0 %v1667
        %2115 = vmatpush1.bf16.msra.mxu0 %v1666
        %2116 = vmatprep.subr.bf16.mxu0 %v1669
        %2117 = vmatpush1.bf16.msra.mxu0 %v1668
        %2118 = vmatprep.subr.bf16.mxu0 %v1671
        %2119 = vmatpush1.bf16.msra.mxu0 %v1670
        %2120 = vmatprep.subr.bf16.mxu0 %v1673
        %2121 = vmatpush1.bf16.msra.mxu0 %v1672
        %2122 = vmatprep.subr.bf16.mxu0 %v1675
        %2123 = vmatpush1.bf16.msra.mxu0 %v1674
        %2124 = vmatprep.subr.bf16.mxu0 %v1677
        %2125 = vmatpush1.bf16.msra.mxu0 %v1676
        %2126 = vmatprep.subr.bf16.mxu0 %v1679
        %2127 = vmatpush1.bf16.msra.mxu0 %v1678
        %2128 = vmatprep.subr.bf16.mxu0 %v1681
        %2129 = vmatpush1.bf16.msra.mxu0 %v1680
        %2130 = vmatprep.subr.bf16.mxu0 %v1683
        %2131 = vmatpush1.bf16.msra.mxu0 %v1682
        %2132 = vmatprep.subr.bf16.mxu0 %v1685
        %2133 = vmatpush1.bf16.msra.mxu0 %v1684
        %2134 = vmatprep.mubr.bf16.mxu0 %v586
        %2135 = vmatmul.mubr.bf16.gmra.mrb[0].mxu0 %v585
        %v2136 = vpop.f32.mrb[0].mxu0
        %v2137 = vadd.f32 %v975, %v2136
        %v2138 = vpop.f32.mrb[0].mxu0
        %v2139 = vadd.f32 %v979, %v2138
        %v2140 = vpop.f32.mrb[0].mxu0
        %v2141 = vadd.f32 %v975, %v2140
        %v2142 = vpop.f32.mrb[0].mxu0
        %v2143 = vadd.f32 %v979, %v2142
        %2144 = vdwg.mxu0
        %2145 = vmatprep.subr.bf16.mxu0 %v1687
        %2146 = vmatpush1.bf16.msra.mxu0 %v1686
        %2147 = vmatprep.subr.bf16.mxu0 %v1689
        %2148 = vmatpush1.bf16.msra.mxu0 %v1688
        %2149 = vmatprep.subr.bf16.mxu0 %v1691
        %2150 = vmatpush1.bf16.msra.mxu0 %v1690
        %2151 = vmatprep.subr.bf16.mxu0 %v1693
        %2152 = vmatpush1.bf16.msra.mxu0 %v1692
        %2153 = vmatprep.subr.bf16.mxu0 %v1695
        %2154 = vmatpush1.bf16.msra.mxu0 %v1694
        %2155 = vmatprep.subr.bf16.mxu0 %v1697
        %2156 = vmatpush1.bf16.msra.mxu0 %v1696
        %2157 = vmatprep.subr.bf16.mxu0 %v1699
        %2158 = vmatpush1.bf16.msra.mxu0 %v1698
        %2159 = vmatprep.subr.bf16.mxu0 %v1701
        %2160 = vmatpush1.bf16.msra.mxu0 %v1700
        %2161 = vmatprep.subr.bf16.mxu0 %v1703
        %2162 = vmatpush1.bf16.msra.mxu0 %v1702
        %2163 = vmatprep.subr.bf16.mxu0 %v1705
        %2164 = vmatpush1.bf16.msra.mxu0 %v1704
        %2165 = vmatprep.subr.bf16.mxu0 %v1707
        %2166 = vmatpush1.bf16.msra.mxu0 %v1706
        %2167 = vmatprep.subr.bf16.mxu0 %v1709
        %2168 = vmatpush1.bf16.msra.mxu0 %v1708
        %2169 = vmatprep.subr.bf16.mxu0 %v1711
        %2170 = vmatpush1.bf16.msra.mxu0 %v1710
        %2171 = vmatprep.subr.bf16.mxu0 %v1713
        %2172 = vmatpush1.bf16.msra.mxu0 %v1712
        %2173 = vmatprep.subr.bf16.mxu0 %v1715
        %2174 = vmatpush1.bf16.msra.mxu0 %v1714
        %2175 = vmatprep.subr.bf16.mxu0 %v1717
        %2176 = vmatpush1.bf16.msra.mxu0 %v1716
        %2177 = vmatprep.mubr.bf16.mxu0 %v618
        %2178 = vmatmul.mubr.bf16.gmra.mrb[0].mxu0 %v606
        %v2179 = vpop.f32.mrb[0].mxu0
        %v2180 = vadd.f32 %v2137, %v2179
        %v2181 = vpop.f32.mrb[0].mxu0
        %v2182 = vadd.f32 %v2139, %v2181
        %v2183 = vpop.f32.mrb[0].mxu0
        %v2184 = vadd.f32 %v2141, %v2183
        %v2185 = vpop.f32.mrb[0].mxu0
        %v2186 = vadd.f32 %v2143, %v2185
        %2187 = vdwg.mxu0
        %2188 = vmatprep.subr.bf16.mxu0 %v1719
        %2189 = vmatpush1.bf16.msra.mxu0 %v1718
        %2190 = vmatprep.subr.bf16.mxu0 %v1721
        %2191 = vmatpush1.bf16.msra.mxu0 %v1720
        %2192 = vmatprep.subr.bf16.mxu0 %v1723
        %2193 = vmatpush1.bf16.msra.mxu0 %v1722
        %2194 = vmatprep.subr.bf16.mxu0 %v1725
        %2195 = vmatpush1.bf16.msra.mxu0 %v1724
        %2196 = vmatprep.subr.bf16.mxu0 %v1727
        %2197 = vmatpush1.bf16.msra.mxu0 %v1726
        %2198 = vmatprep.subr.bf16.mxu0 %v1729
        %2199 = vmatpush1.bf16.msra.mxu0 %v1728
        %2200 = vmatprep.subr.bf16.mxu0 %v1731
        %2201 = vmatpush1.bf16.msra.mxu0 %v1730
        %2202 = vmatprep.subr.bf16.mxu0 %v1733
        %2203 = vmatpush1.bf16.msra.mxu0 %v1732
        %2204 = vmatprep.subr.bf16.mxu0 %v1735
        %2205 = vmatpush1.bf16.msra.mxu0 %v1734
        %2206 = vmatprep.subr.bf16.mxu0 %v1737
        %2207 = vmatpush1.bf16.msra.mxu0 %v1736
        %2208 = vmatprep.subr.bf16.mxu0 %v1739
        %2209 = vmatpush1.bf16.msra.mxu0 %v1738
        %2210 = vmatprep.subr.bf16.mxu0 %v1741
        %2211 = vmatpush1.bf16.msra.mxu0 %v1740
        %2212 = vmatprep.subr.bf16.mxu0 %v1743
        %2213 = vmatpush1.bf16.msra.mxu0 %v1742
        %2214 = vmatprep.subr.bf16.mxu0 %v1745
        %2215 = vmatpush1.bf16.msra.mxu0 %v1744
        %2216 = vmatprep.subr.bf16.mxu0 %v1747
        %2217 = vmatpush1.bf16.msra.mxu0 %v1746
        %2218 = vmatprep.subr.bf16.mxu0 %v1749
        %2219 = vmatpush1.bf16.msra.mxu0 %v1748
        %2220 = vmatprep.mubr.bf16.mxu0 %v632
        %2221 = vmatmul.mubr.bf16.gmra.mrb[0].mxu0 %v629
        %v2222 = vpop.f32.mrb[0].mxu0
        %v2223 = vadd.f32 %v2180, %v2222
        %v2224 = vpop.f32.mrb[0].mxu0
        %v2225 = vadd.f32 %v2182, %v2224
        %v2226 = vpop.f32.mrb[0].mxu0
        %v2227 = vadd.f32 %v2184, %v2226
        %v2228 = vpop.f32.mrb[0].mxu0
        %v2229 = vadd.f32 %v2186, %v2228
        %2230 = vdwg.mxu0
        %2231 = vmatprep.subr.bf16.mxu0 %v1751
        %2232 = vmatpush1.bf16.msra.mxu0 %v1750
        %2233 = vmatprep.subr.bf16.mxu0 %v1753
        %2234 = vmatpush1.bf16.msra.mxu0 %v1752
        %2235 = vmatprep.subr.bf16.mxu0 %v1755
        %2236 = vmatpush1.bf16.msra.mxu0 %v1754
        %2237 = vmatprep.subr.bf16.mxu0 %v1757
        %2238 = vmatpush1.bf16.msra.mxu0 %v1756
        %2239 = vmatprep.subr.bf16.mxu0 %v1759
        %2240 = vmatpush1.bf16.msra.mxu0 %v1758
        %2241 = vmatprep.subr.bf16.mxu0 %v1761
        %2242 = vmatpush1.bf16.msra.mxu0 %v1760
        %2243 = vmatprep.subr.bf16.mxu0 %v1763
        %2244 = vmatpush1.bf16.msra.mxu0 %v1762
        %2245 = vmatprep.subr.bf16.mxu0 %v1765
        %2246 = vmatpush1.bf16.msra.mxu0 %v1764
        %2247 = vmatprep.subr.bf16.mxu0 %v1767
        %2248 = vmatpush1.bf16.msra.mxu0 %v1766
        %2249 = vmatprep.subr.bf16.mxu0 %v1769
        %2250 = vmatpush1.bf16.msra.mxu0 %v1768
        %2251 = vmatprep.subr.bf16.mxu0 %v1771
        %2252 = vmatpush1.bf16.msra.mxu0 %v1770
        %2253 = vmatprep.subr.bf16.mxu0 %v1773
        %2254 = vmatpush1.bf16.msra.mxu0 %v1772
        %2255 = vmatprep.subr.bf16.mxu0 %v1775
        %2256 = vmatpush1.bf16.msra.mxu0 %v1774
        %2257 = vmatprep.subr.bf16.mxu0 %v1777
        %2258 = vmatpush1.bf16.msra.mxu0 %v1776
        %2259 = vmatprep.subr.bf16.mxu0 %v1779
        %2260 = vmatpush1.bf16.msra.mxu0 %v1778
        %2261 = vmatprep.subr.bf16.mxu0 %v1781
        %2262 = vmatpush1.bf16.msra.mxu0 %v1780
        %2263 = vmatprep.mubr.bf16.mxu0 %v674
        %2264 = vmatmul.mubr.bf16.gmra.mrb[0].mxu0 %v657
        %v2265 = vpop.f32.mrb[0].mxu0
        %v2266 = vadd.f32 %v2223, %v2265
        %v2267 = vpop.f32.mrb[0].mxu0
        %v2268 = vadd.f32 %v2225, %v2267
        %v2269 = vpop.f32.mrb[0].mxu0
        %v2270 = vadd.f32 %v2227, %v2269
        %v2271 = vpop.f32.mrb[0].mxu0
        %v2272 = vadd.f32 %v2229, %v2271
        %2273 = vdwg.mxu0
        %2274 = vmatprep.subr.bf16.mxu0 %v1783
        %2275 = vmatpush1.bf16.msra.mxu0 %v1782
        %2276 = vmatprep.subr.bf16.mxu0 %v1785
        %2277 = vmatpush1.bf16.msra.mxu0 %v1784
        %2278 = vmatprep.subr.bf16.mxu0 %v1787
        %2279 = vmatpush1.bf16.msra.mxu0 %v1786
        %2280 = vmatprep.subr.bf16.mxu0 %v1789
        %2281 = vmatpush1.bf16.msra.mxu0 %v1788
        %2282 = vmatprep.subr.bf16.mxu0 %v1791
        %2283 = vmatpush1.bf16.msra.mxu0 %v1790
        %2284 = vmatprep.subr.bf16.mxu0 %v1793
        %2285 = vmatpush1.bf16.msra.mxu0 %v1792
        %2286 = vmatprep.subr.bf16.mxu0 %v1795
        %2287 = vmatpush1.bf16.msra.mxu0 %v1794
        %2288 = vmatprep.subr.bf16.mxu0 %v1797
        %2289 = vmatpush1.bf16.msra.mxu0 %v1796
        %2290 = vmatprep.subr.bf16.mxu0 %v1799
        %2291 = vmatpush1.bf16.msra.mxu0 %v1798
        %2292 = vmatprep.subr.bf16.mxu0 %v1801
        %2293 = vmatpush1.bf16.msra.mxu0 %v1800
        %2294 = vmatprep.subr.bf16.mxu0 %v1803
        %2295 = vmatpush1.bf16.msra.mxu0 %v1802
        %2296 = vmatprep.subr.bf16.mxu0 %v1805
        %2297 = vmatpush1.bf16.msra.mxu0 %v1804
        %2298 = vmatprep.subr.bf16.mxu0 %v1807
        %2299 = vmatpush1.bf16.msra.mxu0 %v1806
        %2300 = vmatprep.subr.bf16.mxu0 %v1809
        %2301 = vmatpush1.bf16.msra.mxu0 %v1808
        %2302 = vmatprep.subr.bf16.mxu0 %v1811
        %2303 = vmatpush1.bf16.msra.mxu0 %v1810
        %2304 = vmatprep.subr.bf16.mxu0 %v1813
        %2305 = vmatpush1.bf16.msra.mxu0 %v1812
        %2306 = vmatprep.mubr.bf16.mxu0 %v688
        %2307 = vmatmul.mubr.bf16.gmra.mrb[0].mxu0 %v685
        %v2308 = vpop.f32.mrb[0].mxu0
        %v2309 = vadd.f32 %v2266, %v2308
        %v2310 = vpop.f32.mrb[0].mxu0
        %v2311 = vadd.f32 %v2268, %v2310
        %v2312 = vpop.f32.mrb[0].mxu0
        %v2313 = vadd.f32 %v2270, %v2312
        %v2314 = vpop.f32.mrb[0].mxu0
        %v2315 = vadd.f32 %v2272, %v2314
        %2316 = vdwg.mxu0
        %2317 = vmatprep.subr.bf16.mxu0 %v1815
        %2318 = vmatpush1.bf16.msra.mxu0 %v1814
        %2319 = vmatprep.subr.bf16.mxu0 %v1817
        %2320 = vmatpush1.bf16.msra.mxu0 %v1816
        %2321 = vmatprep.subr.bf16.mxu0 %v1819
        %2322 = vmatpush1.bf16.msra.mxu0 %v1818
        %2323 = vmatprep.subr.bf16.mxu0 %v1821
        %2324 = vmatpush1.bf16.msra.mxu0 %v1820
        %2325 = vmatprep.subr.bf16.mxu0 %v1823
        %2326 = vmatpush1.bf16.msra.mxu0 %v1822
        %2327 = vmatprep.subr.bf16.mxu0 %v1825
        %2328 = vmatpush1.bf16.msra.mxu0 %v1824
        %2329 = vmatprep.subr.bf16.mxu0 %v1827
        %2330 = vmatpush1.bf16.msra.mxu0 %v1826
        %2331 = vmatprep.subr.bf16.mxu0 %v1829
        %2332 = vmatpush1.bf16.msra.mxu0 %v1828
        %2333 = vmatprep.subr.bf16.mxu0 %v1831
        %2334 = vmatpush1.bf16.msra.mxu0 %v1830
        %2335 = vmatprep.subr.bf16.mxu0 %v1833
        %2336 = vmatpush1.bf16.msra.mxu0 %v1832
        %2337 = vmatprep.subr.bf16.mxu0 %v1835
        %2338 = vmatpush1.bf16.msra.mxu0 %v1834
        %2339 = vmatprep.subr.bf16.mxu0 %v1837
        %2340 = vmatpush1.bf16.msra.mxu0 %v1836
        %2341 = vmatprep.subr.bf16.mxu0 %v1839
        %2342 = vmatpush1.bf16.msra.mxu0 %v1838
        %2343 = vmatprep.subr.bf16.mxu0 %v1841
        %2344 = vmatpush1.bf16.msra.mxu0 %v1840
        %2345 = vmatprep.subr.bf16.mxu0 %v1843
        %2346 = vmatpush1.bf16.msra.mxu0 %v1842
        %2347 = vmatprep.subr.bf16.mxu0 %v1845
        %2348 = vmatpush1.bf16.msra.mxu0 %v1844
        %2349 = vmatprep.mubr.bf16.mxu0 %v729
        %2350 = vmatmul.mubr.bf16.gmra.mrb[0].mxu0 %v712
        %v2351 = vpop.f32.mrb[0].mxu0
        %v2352 = vadd.f32 %v2309, %v2351
        %v2353 = vpop.f32.mrb[0].mxu0
        %v2354 = vadd.f32 %v2311, %v2353
        %v2355 = vpop.f32.mrb[0].mxu0
        %v2356 = vadd.f32 %v2313, %v2355
        %v2357 = vpop.f32.mrb[0].mxu0
        %v2358 = vadd.f32 %v2315, %v2357
        %2359 = vdwg.mxu0
        %2360 = vmatprep.subr.bf16.mxu0 %v1847
        %2361 = vmatpush1.bf16.msra.mxu0 %v1846
        %2362 = vmatprep.subr.bf16.mxu0 %v1849
        %2363 = vmatpush1.bf16.msra.mxu0 %v1848
        %2364 = vmatprep.subr.bf16.mxu0 %v1851
        %2365 = vmatpush1.bf16.msra.mxu0 %v1850
        %2366 = vmatprep.subr.bf16.mxu0 %v1853
        %2367 = vmatpush1.bf16.msra.mxu0 %v1852
        %2368 = vmatprep.subr.bf16.mxu0 %v1855
        %2369 = vmatpush1.bf16.msra.mxu0 %v1854
        %2370 = vmatprep.subr.bf16.mxu0 %v1857
        %2371 = vmatpush1.bf16.msra.mxu0 %v1856
        %2372 = vmatprep.subr.bf16.mxu0 %v1859
        %2373 = vmatpush1.bf16.msra.mxu0 %v1858
        %2374 = vmatprep.subr.bf16.mxu0 %v1861
        %2375 = vmatpush1.bf16.msra.mxu0 %v1860
        %2376 = vmatprep.subr.bf16.mxu0 %v1863
        %2377 = vmatpush1.bf16.msra.mxu0 %v1862
        %2378 = vmatprep.subr.bf16.mxu0 %v1865
        %2379 = vmatpush1.bf16.msra.mxu0 %v1864
        %2380 = vmatprep.subr.bf16.mxu0 %v1867
        %2381 = vmatpush1.bf16.msra.mxu0 %v1866
        %2382 = vmatprep.subr.bf16.mxu0 %v1869
        %2383 = vmatpush1.bf16.msra.mxu0 %v1868
        %2384 = vmatprep.subr.bf16.mxu0 %v1871
        %2385 = vmatpush1.bf16.msra.mxu0 %v1870
        %2386 = vmatprep.subr.bf16.mxu0 %v1873
        %2387 = vmatpush1.bf16.msra.mxu0 %v1872
        %2388 = vmatprep.subr.bf16.mxu0 %v1875
        %2389 = vmatpush1.bf16.msra.mxu0 %v1874
        %2390 = vmatprep.subr.bf16.mxu0 %v1877
        %2391 = vmatpush1.bf16.msra.mxu0 %v1876
        %2392 = vmatprep.mubr.bf16.mxu0 %v743
        %2393 = vmatmul.mubr.bf16.gmra.mrb[0].mxu0 %v740
        %v2394 = vpop.f32.mrb[0].mxu0
        %v2395 = vadd.f32 %v2352, %v2394
        %v2396 = vpop.f32.mrb[0].mxu0
        %v2397 = vadd.f32 %v2354, %v2396
        %v2398 = vpop.f32.mrb[0].mxu0
        %v2399 = vadd.f32 %v2356, %v2398
        %v2400 = vpop.f32.mrb[0].mxu0
        %v2401 = vadd.f32 %v2358, %v2400
        %2402 = vdwg.mxu0
        %v2403 = vmax.f32 %v2395, 0.0
        %v2404 = vmax.f32 %v2397, 0.0
        %v2405 = vmax.f32 %v2399, 0.0
        %v2406 = vmax.f32 %v2401, 0.0
        %v2407 = vld [vmem:[%s385] sm:$0x1]
        %vm2408 = vcmask 122880
        %v2409 = vsel %vm2408, %v2407, 0.0
        %2410 = vadd.xlane.f32.xlu0 %v2409
        %v2411 = vpop.xlane.xlu0 %2410
        %v2412 = vmax.f32 %v2411, 1.0
        %v2413 = vlaneseq
        %v2414 = vshrl.u32 %v2413, 7
        %v2415 = vsub.s32 0, %v2414
        %v2416 = vrot.slane %v2407, %v2415
        %2418 = vbcast.lane.b32.xlu0 %v2416, 256
        %v2419 = vpop.permute.xlu0 %2418
        %s2421 = sor.u32 256, 8
        %2422 = vbcast.lane.b32.xlu0 %v2416, %s2421
        %v2423 = vpop.permute.xlu0 %2422
        %v2424 = vmul.f32 %v2403, %v2419
        %v2425 = vmul.f32 %v2404, %v2419
        %v2426 = vmul.f32 %v2405, %v2423
        %v2427 = vmul.f32 %v2406, %v2423
        %v2428 = vadd.f32 %v2424, %v2426
        %v2429 = vrot.slane %v2428, 4
        %v2430 = vadd.f32 %v2428, %v2429
        %v2431 = vrot.slane %v2430, 2
        %v2432 = vadd.f32 %v2430, %v2431
        %v2433 = vrot.slane %v2432, 1
        %v2434 = vadd.f32 %v2432, %v2433
        %v2435 = vadd.f32 %v2425, %v2427
        %v2436 = vrot.slane %v2435, 4
        %v2437 = vadd.f32 %v2435, %v2436
        %v2438 = vrot.slane %v2437, 2
        %v2439 = vadd.f32 %v2437, %v2438
        %v2440 = vrot.slane %v2439, 1
        %v2441 = vadd.f32 %v2439, %v2440
        %v2442 = vrcp.pop %v2412
        %v2443 = vmul.f32 %v2434, %v2442
        %v2444 = vmul.f32 %v2441, %v2442
        %v2445 = vmax.f32 %v2403, %v2405
        %v2446 = vrot.slane %v2445, 4
        %v2447 = vmax.f32 %v2445, %v2446
        %v2448 = vrot.slane %v2447, 2
        %v2449 = vmax.f32 %v2447, %v2448
        %v2450 = vrot.slane %v2449, 1
        %v2451 = vmax.f32 %v2449, %v2450
        %v2452 = vmax.f32 %v2404, %v2406
        %v2453 = vrot.slane %v2452, 4
        %v2454 = vmax.f32 %v2452, %v2453
        %v2455 = vrot.slane %v2454, 2
        %v2456 = vmax.f32 %v2454, %v2455
        %v2457 = vrot.slane %v2456, 1
        %v2458 = vmax.f32 %v2456, %v2457
        %v2459 = vld [vmem:[%s6] sm:$0xff]
        %v2460 = vld [vmem:[%s6 + $0x8] sm:$0xff]
        %v2461 = vld [vmem:[%s6 + $0x10] sm:$0xff]
        %v2462 = vld [vmem:[%s6 + $0x18] sm:$0xff]
        %v2463 = vld [vmem:[%s6 + $0x20] sm:$0xff]
        %v2464 = vld [vmem:[%s6 + $0x28] sm:$0xff]
        %v2465 = vld [vmem:[%s6 + $0x30] sm:$0xff]
        %v2466 = vld [vmem:[%s6 + $0x38] sm:$0xff]
        %v2467 = vld [vmem:[%s6 + $0x40] sm:$0xff]
        %v2468 = vld [vmem:[%s6 + $0x48] sm:$0xff]
        %v2469 = vld [vmem:[%s6 + $0x50] sm:$0xff]
        %v2470 = vld [vmem:[%s6 + $0x58] sm:$0xff]
        %v2471 = vld [vmem:[%s6 + $0x60] sm:$0xff]
        %v2472 = vld [vmem:[%s6 + $0x68] sm:$0xff]
        %v2473 = vld [vmem:[%s6 + $0x70] sm:$0xff]
        %v2474 = vld [vmem:[%s6 + $0x78] sm:$0xff]
        %v2475 = vld [vmem:[%s6 + $0x80] sm:$0xff]
        %v2476 = vld [vmem:[%s6 + $0x88] sm:$0xff]
        %v2477 = vld [vmem:[%s6 + $0x90] sm:$0xff]
        %v2478 = vld [vmem:[%s6 + $0x98] sm:$0xff]
        %v2479 = vld [vmem:[%s6 + $0xa0] sm:$0xff]
        %v2480 = vld [vmem:[%s6 + $0xa8] sm:$0xff]
        %v2481 = vld [vmem:[%s6 + $0xb0] sm:$0xff]
        %v2482 = vld [vmem:[%s6 + $0xb8] sm:$0xff]
        %v2483 = vld [vmem:[%s6 + $0xc0] sm:$0xff]
        %v2484 = vld [vmem:[%s6 + $0xc8] sm:$0xff]
        %v2485 = vld [vmem:[%s6 + $0xd0] sm:$0xff]
        %v2486 = vld [vmem:[%s6 + $0xd8] sm:$0xff]
        %v2487 = vld [vmem:[%s6 + $0xe0] sm:$0xff]
        %v2488 = vld [vmem:[%s6 + $0xe8] sm:$0xff]
        %v2489 = vld [vmem:[%s6 + $0xf0] sm:$0xff]
        %v2490 = vld [vmem:[%s6 + $0xf8] sm:$0xff]
        %v2491 = vld [vmem:[%s6 + $0x100] sm:$0xff]
        %v2492 = vld [vmem:[%s6 + $0x108] sm:$0xff]
        %v2493 = vld [vmem:[%s6 + $0x110] sm:$0xff]
        %v2494 = vld [vmem:[%s6 + $0x118] sm:$0xff]
        %v2495 = vld [vmem:[%s6 + $0x120] sm:$0xff]
        %v2496 = vld [vmem:[%s6 + $0x128] sm:$0xff]
        %v2497 = vld [vmem:[%s6 + $0x130] sm:$0xff]
        %v2498 = vld [vmem:[%s6 + $0x138] sm:$0xff]
        %v2499 = vld [vmem:[%s6 + $0x140] sm:$0xff]
        %v2500 = vld [vmem:[%s6 + $0x148] sm:$0xff]
        %v2501 = vld [vmem:[%s6 + $0x150] sm:$0xff]
        %v2502 = vld [vmem:[%s6 + $0x158] sm:$0xff]
        %v2503 = vld [vmem:[%s6 + $0x160] sm:$0xff]
        %v2504 = vld [vmem:[%s6 + $0x168] sm:$0xff]
        %v2505 = vld [vmem:[%s6 + $0x170] sm:$0xff]
        %v2506 = vld [vmem:[%s6 + $0x178] sm:$0xff]
        %v2507 = vld [vmem:[%s6 + $0x180] sm:$0xff]
        %v2508 = vld [vmem:[%s6 + $0x188] sm:$0xff]
        %v2509 = vld [vmem:[%s6 + $0x190] sm:$0xff]
        %v2510 = vld [vmem:[%s6 + $0x198] sm:$0xff]
        %v2511 = vld [vmem:[%s6 + $0x1a0] sm:$0xff]
        %v2512 = vld [vmem:[%s6 + $0x1a8] sm:$0xff]
        %v2513 = vld [vmem:[%s6 + $0x1b0] sm:$0xff]
        %v2514 = vld [vmem:[%s6 + $0x1b8] sm:$0xff]
        %v2515 = vld [vmem:[%s6 + $0x1c0] sm:$0xff]
        %v2516 = vld [vmem:[%s6 + $0x1c8] sm:$0xff]
        %v2517 = vld [vmem:[%s6 + $0x1d0] sm:$0xff]
        %v2518 = vld [vmem:[%s6 + $0x1d8] sm:$0xff]
        %v2519 = vld [vmem:[%s6 + $0x1e0] sm:$0xff]
        %v2520 = vld [vmem:[%s6 + $0x1e8] sm:$0xff]
        %v2521 = vld [vmem:[%s6 + $0x1f0] sm:$0xff]
        %v2522 = vld [vmem:[%s6 + $0x1f8] sm:$0xff]
        %2523 = vmatprep.subr.mxu0 0.0
        %2524 = vmatpush1.msra.mxu0 %v2491
        %2525 = vmatprep.subr.mxu0 0.0
        %2526 = vmatpush1.msra.mxu0 %v2492
        %2527 = vmatprep.subr.mxu0 0.0
        %2528 = vmatpush1.msra.mxu0 %v2493
        %2529 = vmatprep.subr.mxu0 0.0
        %2530 = vmatpush1.msra.mxu0 %v2494
        %2531 = vmatprep.subr.mxu0 0.0
        %2532 = vmatpush1.msra.mxu0 %v2495
        %2533 = vmatprep.subr.mxu0 0.0
        %2534 = vmatpush1.msra.mxu0 %v2496
        %2535 = vmatprep.subr.mxu0 0.0
        %2536 = vmatpush1.msra.mxu0 %v2497
        %2537 = vmatprep.subr.mxu0 0.0
        %2538 = vmatpush1.msra.mxu0 %v2498
        %2539 = vmatprep.subr.mxu0 0.0
        %2540 = vmatpush1.msra.mxu0 %v2499
        %2541 = vmatprep.subr.mxu0 0.0
        %2542 = vmatpush1.msra.mxu0 %v2500
        %2543 = vmatprep.subr.mxu0 0.0
        %2544 = vmatpush1.msra.mxu0 %v2501
        %2545 = vmatprep.subr.mxu0 0.0
        %2546 = vmatpush1.msra.mxu0 %v2502
        %2547 = vmatprep.subr.mxu0 0.0
        %2548 = vmatpush1.msra.mxu0 %v2503
        %2549 = vmatprep.subr.mxu0 0.0
        %2550 = vmatpush1.msra.mxu0 %v2504
        %2551 = vmatprep.subr.mxu0 0.0
        %2552 = vmatpush1.msra.mxu0 %v2505
        %2553 = vmatprep.subr.mxu0 0.0
        %2554 = vmatpush1.msra.mxu0 %v2506
        %2555 = vmatprep.subr.mxu0 0.0
        %2556 = vmatpush1.msra.mxu0 %v2507
        %2557 = vmatprep.subr.mxu0 0.0
        %2558 = vmatpush1.msra.mxu0 %v2508
        %2559 = vmatprep.subr.mxu0 0.0
        %2560 = vmatpush1.msra.mxu0 %v2509
        %2561 = vmatprep.subr.mxu0 0.0
        %2562 = vmatpush1.msra.mxu0 %v2510
        %2563 = vmatprep.subr.mxu0 0.0
        %2564 = vmatpush1.msra.mxu0 %v2511
        %2565 = vmatprep.subr.mxu0 0.0
        %2566 = vmatpush1.msra.mxu0 %v2512
        %2567 = vmatprep.subr.mxu0 0.0
        %2568 = vmatpush1.msra.mxu0 %v2513
        %2569 = vmatprep.subr.mxu0 0.0
        %2570 = vmatpush1.msra.mxu0 %v2514
        %2571 = vmatprep.subr.mxu0 0.0
        %2572 = vmatpush1.msra.mxu0 %v2515
        %2573 = vmatprep.subr.mxu0 0.0
        %2574 = vmatpush1.msra.mxu0 %v2516
        %2575 = vmatprep.subr.mxu0 0.0
        %2576 = vmatpush1.msra.mxu0 %v2517
        %2577 = vmatprep.subr.mxu0 0.0
        %2578 = vmatpush1.msra.mxu0 %v2518
        %2579 = vmatprep.subr.mxu0 0.0
        %2580 = vmatpush1.msra.mxu0 %v2519
        %2581 = vmatprep.subr.mxu0 0.0
        %2582 = vmatpush1.msra.mxu0 %v2520
        %2583 = vmatprep.subr.mxu0 0.0
        %2584 = vmatpush1.msra.mxu0 %v2521
        %2585 = vmatprep.subr.mxu0 0.0
        %2586 = vmatpush1.msra.mxu0 %v2522
        %2587 = vmatprep.mubr.f32.mxu0 %v2458
        %2588 = vmatmul.mubr.f32.gmra.mrb[0].mxu0 %v2451
        %v2589 = vpop.f32.mrb[0].mxu0
        %v2590 = vadd.f32 0.0, %v2589
        %v2591 = vpop.f32.mrb[0].mxu0
        %2592 = vdwg.mxu0
        %2593 = vmatprep.subr.mxu0 0.0
        %2594 = vmatpush1.msra.mxu0 %v2459
        %2595 = vmatprep.subr.mxu0 0.0
        %2596 = vmatpush1.msra.mxu0 %v2460
        %2597 = vmatprep.subr.mxu0 0.0
        %2598 = vmatpush1.msra.mxu0 %v2461
        %2599 = vmatprep.subr.mxu0 0.0
        %2600 = vmatpush1.msra.mxu0 %v2462
        %2601 = vmatprep.subr.mxu0 0.0
        %2602 = vmatpush1.msra.mxu0 %v2463
        %2603 = vmatprep.subr.mxu0 0.0
        %2604 = vmatpush1.msra.mxu0 %v2464
        %2605 = vmatprep.subr.mxu0 0.0
        %2606 = vmatpush1.msra.mxu0 %v2465
        %2607 = vmatprep.subr.mxu0 0.0
        %2608 = vmatpush1.msra.mxu0 %v2466
        %2609 = vmatprep.subr.mxu0 0.0
        %2610 = vmatpush1.msra.mxu0 %v2467
        %2611 = vmatprep.subr.mxu0 0.0
        %2612 = vmatpush1.msra.mxu0 %v2468
        %2613 = vmatprep.subr.mxu0 0.0
        %2614 = vmatpush1.msra.mxu0 %v2469
        %2615 = vmatprep.subr.mxu0 0.0
        %2616 = vmatpush1.msra.mxu0 %v2470
        %2617 = vmatprep.subr.mxu0 0.0
        %2618 = vmatpush1.msra.mxu0 %v2471
        %2619 = vmatprep.subr.mxu0 0.0
        %2620 = vmatpush1.msra.mxu0 %v2472
        %2621 = vmatprep.subr.mxu0 0.0
        %2622 = vmatpush1.msra.mxu0 %v2473
        %2623 = vmatprep.subr.mxu0 0.0
        %2624 = vmatpush1.msra.mxu0 %v2474
        %2625 = vmatprep.subr.mxu0 0.0
        %2626 = vmatpush1.msra.mxu0 %v2475
        %2627 = vmatprep.subr.mxu0 0.0
        %2628 = vmatpush1.msra.mxu0 %v2476
        %2629 = vmatprep.subr.mxu0 0.0
        %2630 = vmatpush1.msra.mxu0 %v2477
        %2631 = vmatprep.subr.mxu0 0.0
        %2632 = vmatpush1.msra.mxu0 %v2478
        %2633 = vmatprep.subr.mxu0 0.0
        %2634 = vmatpush1.msra.mxu0 %v2479
        %2635 = vmatprep.subr.mxu0 0.0
        %2636 = vmatpush1.msra.mxu0 %v2480
        %2637 = vmatprep.subr.mxu0 0.0
        %2638 = vmatpush1.msra.mxu0 %v2481
        %2639 = vmatprep.subr.mxu0 0.0
        %2640 = vmatpush1.msra.mxu0 %v2482
        %2641 = vmatprep.subr.mxu0 0.0
        %2642 = vmatpush1.msra.mxu0 %v2483
        %2643 = vmatprep.subr.mxu0 0.0
        %2644 = vmatpush1.msra.mxu0 %v2484
        %2645 = vmatprep.subr.mxu0 0.0
        %2646 = vmatpush1.msra.mxu0 %v2485
        %2647 = vmatprep.subr.mxu0 0.0
        %2648 = vmatpush1.msra.mxu0 %v2486
        %2649 = vmatprep.subr.mxu0 0.0
        %2650 = vmatpush1.msra.mxu0 %v2487
        %2651 = vmatprep.subr.mxu0 0.0
        %2652 = vmatpush1.msra.mxu0 %v2488
        %2653 = vmatprep.subr.mxu0 0.0
        %2654 = vmatpush1.msra.mxu0 %v2489
        %2655 = vmatprep.subr.mxu0 0.0
        %2656 = vmatpush1.msra.mxu0 %v2490
        %2657 = vmatprep.mubr.f32.mxu0 %v2444
        %2658 = vmatmul.mubr.f32.gmra.mrb[0].mxu0 %v2443
        %v2659 = vpop.f32.mrb[0].mxu0
        %v2660 = vadd.f32 %v2590, %v2659
        %v2661 = vpop.f32.mrb[0].mxu0
        %2662 = vdwg.mxu0
        %v2663 = vld [vmem:[%s7] sm:$0x1]
        %v2664 = vadd.f32 %v2660, %v2663
        %v2665 = vmax.f32 %v2664, 0.0
        %v2666 = vld [vmem:[%s8] sm:$0xff]
        %v2667 = vld [vmem:[%s8 + $0x8] sm:$0xff]
        %v2668 = vld [vmem:[%s8 + $0x10] sm:$0xff]
        %v2669 = vld [vmem:[%s8 + $0x18] sm:$0xff]
        %v2670 = vld [vmem:[%s9] sm:$0x1]
        %vm2671 = vcmask 261120
        %v2673 = vsel %vm2671, %v2665, 0
        %2675 = vmatprep.subr.mxu0 0.0
        %2676 = vmatpush1.msra.mxu0 %v2666
        %2677 = vmatprep.subr.mxu0 0.0
        %2678 = vmatpush1.msra.mxu0 %v2667
        %2679 = vmatprep.subr.mxu0 0.0
        %2680 = vmatpush1.msra.mxu0 %v2668
        %2681 = vmatprep.subr.mxu0 0.0
        %2682 = vmatpush1.msra.mxu0 %v2669
        %2683 = vmatprep.subr.mxu0 0.0
        %2684 = vmatpush1.msra.mxu0 0.0
        %2685 = vmatprep.subr.mxu0 0.0
        %2686 = vmatpush1.msra.mxu0 0.0
        %2687 = vmatprep.subr.mxu0 0.0
        %2688 = vmatpush1.msra.mxu0 0.0
        %2689 = vmatprep.subr.mxu0 0.0
        %2690 = vmatpush1.msra.mxu0 0.0
        %2691 = vmatprep.subr.mxu0 0.0
        %2692 = vmatpush1.msra.mxu0 0.0
        %2693 = vmatprep.subr.mxu0 0.0
        %2694 = vmatpush1.msra.mxu0 0.0
        %2695 = vmatprep.subr.mxu0 0.0
        %2696 = vmatpush1.msra.mxu0 0.0
        %2697 = vmatprep.subr.mxu0 0.0
        %2698 = vmatpush1.msra.mxu0 0.0
        %2699 = vmatprep.subr.mxu0 0.0
        %2700 = vmatpush1.msra.mxu0 0.0
        %2701 = vmatprep.subr.mxu0 0.0
        %2702 = vmatpush1.msra.mxu0 0.0
        %2703 = vmatprep.subr.mxu0 0.0
        %2704 = vmatpush1.msra.mxu0 0.0
        %2705 = vmatprep.subr.mxu0 0.0
        %2706 = vmatpush1.msra.mxu0 0.0
        %2707 = vmatprep.subr.mxu0 0.0
        %2708 = vmatpush1.msra.mxu0 0.0
        %2709 = vmatprep.subr.mxu0 0.0
        %2710 = vmatpush1.msra.mxu0 0.0
        %2711 = vmatprep.subr.mxu0 0.0
        %2712 = vmatpush1.msra.mxu0 0.0
        %2713 = vmatprep.subr.mxu0 0.0
        %2714 = vmatpush1.msra.mxu0 0.0
        %2715 = vmatprep.subr.mxu0 0.0
        %2716 = vmatpush1.msra.mxu0 0.0
        %2717 = vmatprep.subr.mxu0 0.0
        %2718 = vmatpush1.msra.mxu0 0.0
        %2719 = vmatprep.subr.mxu0 0.0
        %2720 = vmatpush1.msra.mxu0 0.0
        %2721 = vmatprep.subr.mxu0 0.0
        %2722 = vmatpush1.msra.mxu0 0.0
        %2723 = vmatprep.subr.mxu0 0.0
        %2724 = vmatpush1.msra.mxu0 0.0
        %2725 = vmatprep.subr.mxu0 0.0
        %2726 = vmatpush1.msra.mxu0 0.0
        %2727 = vmatprep.subr.mxu0 0.0
        %2728 = vmatpush1.msra.mxu0 0.0
        %2729 = vmatprep.subr.mxu0 0.0
        %2730 = vmatpush1.msra.mxu0 0.0
        %2731 = vmatprep.subr.mxu0 0.0
        %2732 = vmatpush1.msra.mxu0 0.0
        %2733 = vmatprep.subr.mxu0 0.0
        %2734 = vmatpush1.msra.mxu0 0.0
        %2735 = vmatprep.subr.mxu0 0.0
        %2736 = vmatpush1.msra.mxu0 0.0
        %2737 = vmatprep.subr.mxu0 0.0
        %2738 = vmatpush1.msra.mxu0 0.0
        %2739 = vmatprep.mubr.f32.mxu0 0.0
        %2740 = vmatmul.mubr.f32.gmra.mrb[0].mxu0 %v2673
        %v2741 = vpop.f32.mrb[0].mxu0
        %v2742 = vadd.f32 %v2670, %v2741
        %v2743 = vpop.f32.mrb[0].mxu0
        %2744 = vdwg.mxu0
        %2745 = vst [vmem:[%s377] sm:$0x1] %v2742
        %s2746 = sand.u32 %s253, 1
        %s2747 = scalar_lea.sflag [#allocation5], %s2746
        %s2748 = sand.u32 %s253, 1
        %s2749 = scalar_lea.vmem [#allocation6], %s2748
        // Predicated region
        $region65: #{tpu_custom_call.1} parent=59 // pred_check
          %p2750 = pneg %p263
        $region66: #{tpu_custom_call.1} parent=59 // pred_check_branch
          %2752 = sbr.rel (%p2750) target = $region68
        $region67: #{tpu_custom_call.1} parent=59 // pred_region
          %s2754 = ssub.s32 16, 16
          %2755 = vsyncadd %s2747, %s2754
          %s2756 = smul.addr %s25, 16
          %s2757 = scalar_lea.hbm %s10, %s2756
          %s2759 = sshll.u32 %s2749, 4
          %s2760 = int_to_ptr.vmem [resolvable:$true] %s2759
          %2762 = dma.vmem_to_hbm [thread:$0]  %s2760, 16, %s2757, %s2747
        $region68: #{tpu_custom_call.1} parent=59 // pred_fallthru
          _
      $region60: #{tpu_custom_call.1} parent=5 // pred_fallthru
        _
      %p2763 = scmp.le.s32.totalorder 2, %s20
      // Predicated region
      $region69: #{tpu_custom_call.1} parent=5 // pred_check
        %p2764 = pneg %p2763
      $region70: #{tpu_custom_call.1} parent=5 // pred_check_branch
        %2766 = sbr.rel (%p2764) target = $region72
      $region71: #{tpu_custom_call.1} parent=5 // pred_region
        %s2767 = ssub.s32 %s20, 2
        // Predicated region
        $region73: #{tpu_custom_call.1} parent=71 // pred_check
          %p2768 = pneg %p269
        $region74: #{tpu_custom_call.1} parent=71 // pred_check_branch
          %2770 = sbr.rel (%p2768) target = $region76
        $region75: #{tpu_custom_call.1} parent=71 // pred_region
          %s2771 = sand.u32 %s254, 1
          %s2772 = scalar_lea.sflag [#allocation5], %s2771
          %s2773 = sand.u32 %s254, 1
          %s2774 = scalar_lea.vmem [#allocation6], %s2773
          %2775 = dma.done %s2772, 16
        $region76: #{tpu_custom_call.1} parent=71 // pred_fallthru
          _
      $region72: #{tpu_custom_call.1} parent=5 // pred_fallthru
        _
    $region6: #{tpu_custom_call.1} parent=1 // loop_footer
      %s24 = sadd.s32 1, %s20
    $region7: #{tpu_custom_call.1} parent=1 // loop_footer_branch
      %19 = sbr.rel target = $region3
    $region8: #{tpu_custom_call.1} parent=1 // loop_exit
      _
    %2776 = vsyncpa [#allocation4], 1
    %s2777 = scalar_lea.sflag [#allocation4], 1
    %2778 = vsyncpa %s2777, 1
    %2779 = vsyncpa [#allocation5], 1
    %s2780 = scalar_lea.sflag [#allocation5], 1
    %2781 = vsyncpa %s2780, 1

</llo_original>
